<compile_context>
chip_gen: v7x
topology: tpu7x:2x2x1
jax: 0.10.0
libtpu: 0.0.40
codegen_flags: <defaults>
</compile_context>

<pallas_src>
import functools
import math

import jax
import jax.numpy as jnp
from jax.experimental import pallas as pl
from jax.experimental.pallas import tpu as pltpu

BN_SCALE = 1.0 / math.sqrt(1.0 + 1e-5)  # eval-mode BatchNorm fold (mean=0, var=1, gamma=1, beta=0)
# TODO(synk): with trained BN statistics the per-channel scale/bias must come from the checkpoint.


def _round_up(x, m):
    return -(-x // m) * m


def _tile_size(dim, cap=512):
    """Pick a tile (multiple of 128, <= cap) with modest padding waste."""
    dim_r = _round_up(dim, 128)
    if dim_r <= cap:
        return dim_r
    for t in (1024, 512, 384, 256, 128):
        if t > cap:
            continue
        pad = _round_up(dim, t) - dim
        if pad <= max(dim // 8, 128) or t == 128:
            return t
    return 128


# ----------------------------------------------------------------------------
# Pallas kernel: tiled bf16 matmul with fused bias(/ReLU) epilogue.
# BN scale is folded into the weights before the call.
# ----------------------------------------------------------------------------
def _mm_kernel(x_ref, w_ref, b_ref, o_ref, acc_ref, *, relu):
    @pl.when(pl.program_id(2) == 0)
    def _init():
        acc_ref[...] = jnp.zeros_like(acc_ref)

    acc_ref[...] += jnp.dot(x_ref[...], w_ref[...], preferred_element_type=jnp.float32)

    @pl.when(pl.program_id(2) == pl.num_programs(2) - 1)
    def _fin():
        y = acc_ref[...] + b_ref[...]
        if relu:
            y = jnp.maximum(y, 0.0)
        o_ref[...] = y.astype(o_ref.dtype)


def pallas_matmul(x, w, scale=None, bias=None, relu=False, out_dtype=jnp.float32):
    M, K = x.shape
    K2, N = w.shape
    assert K == K2
    w = w.astype(jnp.float32)
    if scale is not None:                      # fold BN scale into the weight matrix
        w = w * jnp.asarray(scale, jnp.float32)
    xb = x.astype(jnp.bfloat16)
    wb = w.astype(jnp.bfloat16)
    bp = (jnp.zeros((1, N), jnp.float32) if bias is None
          else bias.astype(jnp.float32).reshape(1, N))

    # For skinny outputs (N <= 128) stream larger M tiles: fewer grid steps, better roofline.
    n_r = _round_up(N, 128)
    tm = _tile_size(M, cap=1024 if n_r <= 128 else 512)
    tk, tn = _tile_size(K), _tile_size(N)
    Mp, Kp, Np = _round_up(M, tm), _round_up(K, tk), _round_up(N, tn)
    if (Mp, Kp) != (M, K):
        xb = jnp.pad(xb, ((0, Mp - M), (0, Kp - K)))
    if (Kp, Np) != (K, N):
        wb = jnp.pad(wb, ((0, Kp - K), (0, Np - N)))
    if Np != N:
        bp = jnp.pad(bp, ((0, 0), (0, Np - N)))

    out = pl.pallas_call(
        functools.partial(_mm_kernel, relu=relu),
        out_shape=jax.ShapeDtypeStruct((Mp, Np), out_dtype),
        grid_spec=pltpu.PrefetchScalarGridSpec(
            num_scalar_prefetch=0,
            grid=(Mp // tm, Np // tn, Kp // tk),
            in_specs=[
                pl.BlockSpec((tm, tk), lambda i, j, k: (i, k)),
                pl.BlockSpec((tk, tn), lambda i, j, k: (k, j)),
                pl.BlockSpec((1, tn), lambda i, j, k: (0, j)),
            ],
            out_specs=pl.BlockSpec((tm, tn), lambda i, j, k: (i, j)),
            scratch_shapes=[pltpu.VMEM((tm, tn), jnp.float32)],
        ),
        compiler_params=pltpu.CompilerParams(
            dimension_semantics=("parallel", "parallel", "arbitrary")),
    )(xb, wb, bp)
    if (Mp, Np) != (M, N):
        out = out[:M, :N]
    return out


# ----------------------------------------------------------------------------
# Pallas kernel: direct 3x3 conv (stride 1, dilation dil, "same"), the 9 taps
# are accumulated in-kernel so there is NO HBM im2col patch materialization.
# ----------------------------------------------------------------------------
def _conv2d_direct_kernel(x_ref, w_ref, b_ref, o_ref, *, H, W, dil, relu):
    wv = w_ref[...]                               # (3, 3, Cin, Cout) bf16
    Cin = wv.shape[2]
    Cout = wv.shape[3]
    acc = None
    for dy in range(3):
        for dx in range(3):
            xs = x_ref[dy * dil:dy * dil + H, dx * dil:dx * dil + W, :]
            part = jnp.dot(xs.reshape(H * W, Cin), wv[dy, dx],
                           preferred_element_type=jnp.float32)
            acc = part if acc is None else acc + part
    y = acc + b_ref[...]
    if relu:
        y = jnp.maximum(y, 0.0)
    o_ref[...] = y.reshape(H, W, Cout).astype(o_ref.dtype)


def conv2d_direct(x, w, dil, scale=None, bias=None, relu=False, out_dtype=jnp.bfloat16):
    B, H, W, Cin = x.shape
    Cout = w.shape[-1]
    wf = w.astype(jnp.float32)
    if scale is not None:
        wf = wf * jnp.asarray(scale, jnp.float32)
    wb = wf.astype(jnp.bfloat16)
    bp = (jnp.zeros((1, Cout), jnp.float32) if bias is None
          else bias.astype(jnp.float32).reshape(1, Cout))
    xp = jnp.pad(x.astype(jnp.bfloat16), ((0, 0), (dil, dil), (dil, dil), (0, 0)))
    Hp, Wp = H + 2 * dil, W + 2 * dil
    # TODO(synk): tile H with halo windows for large images; one full plane per step here.
    return pl.pallas_call(
        functools.partial(_conv2d_direct_kernel, H=H, W=W, dil=dil, relu=relu),
        out_shape=jax.ShapeDtypeStruct((B, H, W, Cout), out_dtype),
        grid_spec=pltpu.PrefetchScalarGridSpec(
            num_scalar_prefetch=0,
            grid=(B,),
            in_specs=[
                pl.BlockSpec((None, Hp, Wp, Cin), lambda b: (b, 0, 0, 0)),
                pl.BlockSpec((3, 3, Cin, Cout), lambda b: (0, 0, 0, 0)),
                pl.BlockSpec((1, Cout), lambda b: (0, 0)),
            ],
            out_specs=pl.BlockSpec((None, H, W, Cout), lambda b: (b, 0, 0, 0)),
        ),
        compiler_params=pltpu.CompilerParams(
            dimension_semantics=("parallel",),
            vmem_limit_bytes=48 * 1024 * 1024),
    )(xp, wb, bp)


# ----------------------------------------------------------------------------
# Pallas kernel: full-channel depthwise 3x3x3 conv (stride 1, "same"),
# local-value tap accumulation (no scratch RMW, single output store),
# fused bias / BN-scale / ReLU epilogue, bf16 in/out.
# ----------------------------------------------------------------------------
def _dw3d_kernel(x_ref, w_ref, b_ref, o_ref, *, td, H, W, relu):
    wv = w_ref[...]                                   # (3, 3, 3, 1, C) f32
    acc = None
    for dz in range(3):
        for dy in range(3):
            for dx in range(3):
                xs = x_ref[dz:dz + td, dy:dy + H, dx:dx + W, :].astype(jnp.float32)
                term = xs * wv[dz, dy, dx]
                acc = term if acc is None else acc + term
    y = acc + b_ref[...]
    if relu:
        y = jnp.maximum(y, 0.0)
    o_ref[...] = y.astype(o_ref.dtype)


def dwconv3d_fused(x, w_full, bias, relu=False):
    """x: (B, D, H, W, C) -> (B, D, H, W, C) bf16.  w_full: (3, 3, 3, C), bias: (C,)."""
    B, D, H, W, C = x.shape
    xp = jnp.pad(x.astype(jnp.bfloat16), ((0, 0), (1, 1), (1, 1), (1, 1), (0, 0)))
    Hp, Wp = H + 2, W + 2
    # Depth tile: largest divisor of D whose pipelined working set fits the budget.
    budget = 28 * 1024 * 1024
    td = 1
    for cand in range(D, 0, -1):
        if D % cand:
            continue
        need = (2 * (cand + 2) * Hp * Wp * C * 2     # double-buffered bf16 input block
                + 2 * cand * H * W * C * 2           # double-buffered bf16 output block
                + 2 * cand * H * W * C * 4)          # f32 accumulation temporaries
        if need <= budget:
            td = cand
            break
    nD = D // td
    if nD == 1:
        xt = xp
    else:
        # TODO(synk): replace the halo-duplicating stack with element-offset (overlapping)
        # D windows; also tile H for very large planes / v7x's smaller VMEM.
        xt = jnp.stack([xp[:, i * td:i * td + td + 2] for i in range(nD)],
                       axis=1).reshape(B * nD, td + 2, Hp, Wp, C)
    wr = w_full.reshape(3, 3, 3, 1, C).astype(jnp.float32)
    br = bias.reshape(1, C).astype(jnp.float32)
    out = pl.pallas_call(
        functools.partial(_dw3d_kernel, td=td, H=H, W=W, relu=relu),
        out_shape=jax.ShapeDtypeStruct((B * nD, td, H, W, C), jnp.bfloat16),
        grid_spec=pltpu.PrefetchScalarGridSpec(
            num_scalar_prefetch=0,
            grid=(B * nD,),
            in_specs=[
                pl.BlockSpec((None, td + 2, Hp, Wp, C), lambda i: (i, 0, 0, 0, 0)),
                pl.BlockSpec((3, 3, 3, 1, C), lambda i: (0, 0, 0, 0, 0)),
                pl.BlockSpec((1, C), lambda i: (0, 0)),
            ],
            out_specs=pl.BlockSpec((None, td, H, W, C), lambda i: (i, 0, 0, 0, 0)),
        ),
        compiler_params=pltpu.CompilerParams(
            dimension_semantics=("parallel",),
            vmem_limit_bytes=48 * 1024 * 1024),
    )(xt, wr, br)
    return out.reshape(B, D, H, W, C)


# ----------------------------------------------------------------------------
# Pallas kernel: 3x3x3 conv with a single output channel (classif3) computed as
# VPU multiply + lane reduction (avoids im2col and N=1 MXU underfill).
# ----------------------------------------------------------------------------
def _conv3d_c1_kernel(x_ref, w_ref, o_ref, *, D, H, W):
    wv = w_ref[...]                                   # (3, 3, 3, C) f32
    acc = None
    for dz in range(3):
        for dy in range(3):
            for dx in range(3):
                xs = x_ref[dz:dz + D, dy:dy + H, dx:dx + W, :].astype(jnp.float32)
                term = jnp.sum(xs * wv[dz, dy, dx], axis=-1)    # (D, H, W)
                acc = term if acc is None else acc + term
    o_ref[...] = acc


def conv3d_c1(x, w):
    """x: (B, D, H, W, C), w: (3, 3, 3, C) -> (B, D, H, W) f32 (no bias)."""
    B, D, H, W, C = x.shape
    xp = jnp.pad(x.astype(jnp.bfloat16), ((0, 0), (1, 1), (1, 1), (1, 1), (0, 0)))
    wr = w.astype(jnp.float32)
    # TODO(synk): tile D/H for large volumes; classif3 runs once at quarter resolution.
    return pl.pallas_call(
        functools.partial(_conv3d_c1_kernel, D=D, H=H, W=W),
        out_shape=jax.ShapeDtypeStruct((B, D, H, W), jnp.float32),
        grid_spec=pltpu.PrefetchScalarGridSpec(
            num_scalar_prefetch=0,
            grid=(B,),
            in_specs=[
                pl.BlockSpec((None, D + 2, H + 2, W + 2, C), lambda b: (b, 0, 0, 0, 0)),
                pl.BlockSpec((3, 3, 3, C), lambda b: (0, 0, 0, 0)),
            ],
            out_specs=pl.BlockSpec((None, D, H, W), lambda b: (b, 0, 0, 0)),
        ),
        compiler_params=pltpu.CompilerParams(
            dimension_semantics=("parallel",),
            vmem_limit_bytes=48 * 1024 * 1024),
    )(xp, wr)


# ----------------------------------------------------------------------------
# Pallas kernel: fused concat cost volume + DF channel.  The right feature is
# shifted by the disparity with a dynamic pl.ds window over a zero-padded copy,
# so no gather / transpose / mask / concat passes in HBM.
# ----------------------------------------------------------------------------
def _concat_vol_kernel(l_ref, r_ref, df_ref, o_ref, *, D4, W):
    d = pl.program_id(1)
    l = l_ref[...]                                                    # (H, W, C)
    valid = jax.lax.broadcasted_iota(jnp.int32, l.shape, 1) >= d
    lm = jnp.where(valid, l, jnp.zeros_like(l))
    r = r_ref[:, pl.ds(D4 - d, W), :]            # right shifted by d; pad zeros where w < d
    o_ref[...] = jnp.concatenate([lm, r, df_ref[...]], axis=-1)


def build_df_concat_volume(left, right, df, D4):
    """left/right: (B, H, W, C); df: (B, H, W) -> (B, D4, H, W, 2C+1) bf16."""
    B, H, W, C = left.shape
    lb = left.astype(jnp.bfloat16)
    rb = jnp.pad(right.astype(jnp.bfloat16), ((0, 0), (0, 0), (D4, 0), (0, 0)))
    db = df.reshape(B, H, W, 1).astype(jnp.bfloat16)
    return pl.pallas_call(
        functools.partial(_concat_vol_kernel, D4=D4, W=W),
        out_shape=jax.ShapeDtypeStruct((B, D4, H, W, 2 * C + 1), jnp.bfloat16),
        grid_spec=pltpu.PrefetchScalarGridSpec(
            num_scalar_prefetch=0,
            grid=(B, D4),
            in_specs=[
                pl.BlockSpec((None, H, W, C), lambda b, d: (b, 0, 0, 0)),
                pl.BlockSpec((None, H, W + D4, C), lambda b, d: (b, 0, 0, 0)),
                pl.BlockSpec((None, H, W, 1), lambda b, d: (b, 0, 0, 0)),
            ],
            out_specs=pl.BlockSpec((None, None, H, W, 2 * C + 1),
                                   lambda b, d: (b, d, 0, 0, 0)),
        ),
        compiler_params=pltpu.CompilerParams(
            dimension_semantics=("parallel", "parallel")),
    )(lb, rb, db)


# ----------------------------------------------------------------------------
# Pallas kernel: fused flash-style attention for SelfAttnPropagation
# (online softmax over key tiles, scalar value channel).
# ----------------------------------------------------------------------------
def _flow_attn_kernel(q_ref, k_ref, v_ref, o_ref, m_sc, l_sc, acc_sc, *, L, tk, masked):
    ki = pl.program_id(2)

    @pl.when(ki == 0)
    def _init():
        m_sc[...] = jnp.full_like(m_sc, -jnp.inf)
        l_sc[...] = jnp.zeros_like(l_sc)
        acc_sc[...] = jnp.zeros_like(acc_sc)

    s = jax.lax.dot_general(q_ref[...], k_ref[...], (((1,), (1,)), ((), ())),
                            preferred_element_type=jnp.float32)          # (tq, tk)
    if masked:
        kidx = ki * tk + jax.lax.broadcasted_iota(jnp.int32, s.shape, 1)
        s = jnp.where(kidx < L, s, -1e30)
    m_prev = m_sc[...]
    m_new = jnp.maximum(m_prev, jnp.max(s, axis=-1, keepdims=True))
    alpha = jnp.exp(m_prev - m_new)
    p = jnp.exp(s - m_new)
    l_sc[...] = alpha * l_sc[...] + jnp.sum(p, axis=-1, keepdims=True)
    acc_sc[...] = alpha * acc_sc[...] + jnp.dot(p, v_ref[...],
                                                preferred_element_type=jnp.float32)
    m_sc[...] = m_new

    @pl.when(ki == pl.num_programs(2) - 1)
    def _fin():
        o_ref[...] = acc_sc[...] * pl.reciprocal(l_sc[...], approx=True)


def flow_attn_f(feature0, disp, p):
    B, H, W, C = feature0.shape
    L = H * W
    feat = feature0.reshape(B * L, C)
    inv = 1.0 / math.sqrt(C)                       # fold 1/sqrt(C) into the q projection
    q = pallas_matmul(feat, p['qw'] * inv, bias=p['qb'] * inv,
                      out_dtype=jnp.bfloat16).reshape(B, L, C)
    k = pallas_matmul(feat, p['kw'], bias=p['kb'],
                      out_dtype=jnp.bfloat16).reshape(B, L, C)
    v = disp.astype(jnp.float32).reshape(B, L, 1)
    TB = min(512, _round_up(L, 128))
    Lp = _round_up(L, TB)
    if Lp != L:
        q = jnp.pad(q, ((0, 0), (0, Lp - L), (0, 0)))
        k = jnp.pad(k, ((0, 0), (0, Lp - L), (0, 0)))
        v = jnp.pad(v, ((0, 0), (0, Lp - L), (0, 0)))
    out = pl.pallas_call(
        functools.partial(_flow_attn_kernel, L=L, tk=TB, masked=(Lp != L)),
        out_shape=jax.ShapeDtypeStruct((B, Lp, 1), jnp.float32),
        grid_spec=pltpu.PrefetchScalarGridSpec(
            num_scalar_prefetch=0,
            grid=(B, Lp // TB, Lp // TB),
            in_specs=[
                pl.BlockSpec((None, TB, C), lambda b, qi, ki: (b, qi, 0)),
                pl.BlockSpec((None, TB, C), lambda b, qi, ki: (b, ki, 0)),
                pl.BlockSpec((None, TB, 1), lambda b, qi, ki: (b, ki, 0)),
            ],
            out_specs=pl.BlockSpec((None, TB, 1), lambda b, qi, ki: (b, qi, 0)),
            scratch_shapes=[pltpu.VMEM((TB, 1), jnp.float32),
                            pltpu.VMEM((TB, 1), jnp.float32),
                            pltpu.VMEM((TB, 1), jnp.float32)],
        ),
        compiler_params=pltpu.CompilerParams(
            dimension_semantics=("parallel", "parallel", "arbitrary")),
    )(q, k, v)
    return out[:, :L, 0].reshape(B, H, W)


# ----------------------------------------------------------------------------
# Pallas kernel: fused softmax + expectation over axis 1 of (B, R, H, W)
# (disparity regression / correspondence regression) -- lane-dense over W.
# Disparity values come from an in-kernel iota; the optional x_r <= x_l mask of
# the stereo correlation is fused in (masked=True).
# ----------------------------------------------------------------------------
def _disp_reg_kernel(s_ref, o_ref, *, masked):
    s = s_ref[...].astype(jnp.float32)          # (R, th, tw)
    ridx = jax.lax.broadcasted_iota(jnp.float32, s.shape, 0)
    if masked:
        w_glob = (pl.program_id(2) * s.shape[2]
                  + jax.lax.broadcasted_iota(jnp.int32, s.shape, 2))
        s = jnp.where(jax.lax.broadcasted_iota(jnp.int32, s.shape, 0) <= w_glob, s, -1e30)
    m = jnp.max(s, axis=0, keepdims=True)
    e = jnp.exp(s - m)
    num = jnp.sum(e * ridx, axis=0)
    den = jnp.sum(e, axis=0)
    o_ref[...] = num / den


def softmax_expectation(scores, masked=False):
    """scores: (B, R, H, W).  Returns sum_r softmax_r(scores) * r -> (B, H, W)."""
    B, R, H, W = scores.shape
    isz = scores.dtype.itemsize
    budget = 6 * 1024 * 1024
    tw = W
    if W % 128 == 0 and R * 8 * W * isz > budget:
        tw = 512 if W % 512 == 0 else (256 if W % 256 == 0 else 128)
    cands = [d for d in range(H, 0, -1) if H % d == 0 and (d == H or d % 8 == 0)]
    th = cands[-1]
    for cand in cands:
        if R * cand * tw * isz <= budget:
            th = cand
            break
    return pl.pallas_call(
        functools.partial(_disp_reg_kernel, masked=masked),
        out_shape=jax.ShapeDtypeStruct((B, H, W), jnp.float32),
        grid_spec=pltpu.PrefetchScalarGridSpec(
            num_scalar_prefetch=0,
            grid=(B, H // th, W // tw),
            in_specs=[
                pl.BlockSpec((None, R, th, tw), lambda b, hi, wi: (b, 0, hi, wi)),
            ],
            out_specs=pl.BlockSpec((None, th, tw), lambda b, hi, wi: (b, hi, wi)),
        ),
        compiler_params=pltpu.CompilerParams(
            dimension_semantics=("parallel", "parallel", "parallel")),
    )(scores)


# ----------------------------------------------------------------------------
# Convolution wrappers
# ----------------------------------------------------------------------------
def conv2d(x, w, stride, pad, dilation, scale=None, bias=None, relu=False,
           out_dtype=jnp.bfloat16):
    B, H, W, Cin = x.shape
    kh, kw, _, Cout = w.shape
    if stride == 1 and (kh, kw) == (3, 3) and pad == dilation and W % 8 == 0:
        return conv2d_direct(x, w, dilation, scale, bias, relu, out_dtype)
    # TODO(synk): strided / tiny-spatial convs fall back to JAX-side im2col + Pallas matmul.
    xp = jnp.pad(x.astype(jnp.bfloat16), ((0, 0), (pad, pad), (pad, pad), (0, 0)))
    Hp, Wp = H + 2 * pad, W + 2 * pad
    Ho = (Hp - dilation * (kh - 1) - 1) // stride + 1
    Wo = (Wp - dilation * (kw - 1) - 1) // stride + 1
    cols = []
    for i in range(kh):
        for j in range(kw):
            cols.append(xp[:, i * dilation:i * dilation + (Ho - 1) * stride + 1:stride,
                           j * dilation:j * dilation + (Wo - 1) * stride + 1:stride, :])
    patches = jnp.concatenate(cols, axis=-1).reshape(B * Ho * Wo, kh * kw * Cin)
    out = pallas_matmul(patches, w.reshape(kh * kw * Cin, Cout), scale, bias, relu, out_dtype)
    return out.reshape(B, Ho, Wo, Cout)


def convbn2d(x, w, stride, pad, dilation, relu):
    return conv2d(x, w, stride, pad, dilation, scale=BN_SCALE, relu=relu)


def conv3d_1x1(x, w, scale=None, bias=None, relu=False, out_dtype=jnp.bfloat16):
    B, D, H, W, C = x.shape
    cout = w.shape[-1]
    out = pallas_matmul(x.reshape(-1, C), w.reshape(C, cout), scale, bias, relu, out_dtype)
    return out.reshape(B, D, H, W, cout)


def conv_transpose3d(x, w, scale=None, bias=None, out_dtype=jnp.bfloat16):
    """ConvTranspose3d (kernel 3, stride 2, padding 1, output_padding 1 -> 2x upsample)
    via sub-pixel phase decomposition: no zero-stuffing, ~8x fewer MACs.
    w layout: (3, 3, 3, Cin, Cout)."""
    # TODO(synk): fuse the redir skip-add / ReLU and the phase interleave into the matmul
    # epilogue (strided output windows) to drop the stack+transpose pass.
    B, D, H, W, C = x.shape
    Cout = w.shape[-1]
    xpad = jnp.pad(x.astype(jnp.bfloat16), ((0, 0), (0, 1), (0, 1), (0, 1), (0, 0)))
    taps = {0: ((1, 0),), 1: ((2, 0), (0, 1))}    # output phase -> ((kernel tap, input offset), ..)
    phase_outs = []
    for pd in (0, 1):
        for ph in (0, 1):
            for pw in (0, 1):
                cols, wrows = [], []
                for kd, od in taps[pd]:
                    for kh, oh in taps[ph]:
                        for kw, ow in taps[pw]:
                            cols.append(xpad[:, od:od + D, oh:oh + H, ow:ow + W, :])
                            wrows.append(w[kd, kh, kw])
                patches = jnp.concatenate(cols, axis=-1).reshape(B * D * H * W, len(cols) * C)
                wmat = jnp.concatenate(wrows, axis=0)
                y = pallas_matmul(patches, wmat, scale, bias, False, out_dtype)
                phase_outs.append(y.reshape(B, D, H, W, Cout))
    stacked = jnp.stack(phase_outs, axis=0).reshape(2, 2, 2, B, D, H, W, Cout)
    return jnp.transpose(stacked, (3, 4, 0, 5, 1, 6, 2, 7)).reshape(B, 2 * D, 2 * H, 2 * W, Cout)


# ----------------------------------------------------------------------------
# Resizing helpers (glue)
# ----------------------------------------------------------------------------
def _resize_axis_linear(x, axis, out_size, align_corners):
    in_size = x.shape[axis]
    if in_size == out_size:
        return x
    if align_corners:
        if out_size == 1:
            src = jnp.zeros((1,), jnp.float32)
        else:
            src = jnp.arange(out_size, dtype=jnp.float32) * ((in_size - 1) / (out_size - 1))
    else:
        src = (jnp.arange(out_size, dtype=jnp.float32) + 0.5) * (in_size / out_size) - 0.5
        src = jnp.clip(src, 0.0, float(in_size - 1))
    lo = jnp.clip(jnp.floor(src).astype(jnp.int32), 0, in_size - 1)
    hi = jnp.clip(lo + 1, 0, in_size - 1)
    t = src - lo.astype(jnp.float32)
    xlo = jnp.take(x, lo, axis=axis)
    xhi = jnp.take(x, hi, axis=axis)
    shape = [1] * x.ndim
    shape[axis] = out_size
    t = t.reshape(shape)
    return xlo * (1.0 - t) + xhi * t


def resize_bilinear(x, size, align_corners):
    x = _resize_axis_linear(x, 1, size[0], align_corners)
    x = _resize_axis_linear(x, 2, size[1], align_corners)
    return x


def resize_trilinear(x, size, align_corners):
    x = _resize_axis_linear(x, 1, size[0], align_corners)
    x = _resize_axis_linear(x, 2, size[1], align_corners)
    x = _resize_axis_linear(x, 3, size[2], align_corners)
    return x


# ----------------------------------------------------------------------------
# Parameter generation (deterministic, He-style normal like the PyTorch init loop)
# ----------------------------------------------------------------------------
class ParamGen:
    def __init__(self, seed=0):
        self.key = jax.random.PRNGKey(seed)

    def _next(self):
        self.key, sub = jax.random.split(self.key)
        return sub

    def normal(self, shape, std):
        return std * jax.random.normal(self._next(), shape, jnp.float32)

    def conv2d(self, kh, kw, cin, cout):
        return self.normal((kh, kw, cin, cout), math.sqrt(2.0 / (kh * kw * cout)))

    def conv3d(self, kd, kh, kw, cin, cout):
        return self.normal((kd, kh, kw, cin, cout), math.sqrt(2.0 / (kd * kh * kw * cout)))

    def dw3d(self, kd, kh, kw, c):
        w = self.normal((kd, kh, kw, c), math.sqrt(2.0 / (kd * kh * kw * c)))
        b = self.normal((c,), 0.05)
        return w, b

    def linear_w(self, cin, cout):
        return self.normal((cin, cout), 1.0 / math.sqrt(cin))


def make_layer_params(pg, inplanes, planes, blocks, stride):
    layer = []
    for b in range(blocks):
        cin = inplanes if b == 0 else planes
        blk = {'c1': pg.conv2d(3, 3, cin, planes), 'c2': pg.conv2d(3, 3, planes, planes)}
        if b == 0 and (stride != 1 or cin != planes):
            blk['ds'] = pg.conv2d(1, 1, cin, planes)
        layer.append(blk)
    return layer


def make_feature_extraction(pg):
    return {
        'first': [pg.conv2d(3, 3, 3, 32), pg.conv2d(3, 3, 32, 32), pg.conv2d(3, 3, 32, 32)],
        'layer1': make_layer_params(pg, 32, 32, 3, 2),
        'layer2': make_layer_params(pg, 32, 64, 3, 2),
        'layer3': make_layer_params(pg, 64, 128, 3, 2),
        'layer4': make_layer_params(pg, 128, 128, 3, 1),
    }


def make_loftr_layer(pg, d_model=320, nhead=8):
    return {
        'nhead': nhead,
        'q': pg.linear_w(d_model, d_model),
        'k': pg.linear_w(d_model, d_model),
        'v': pg.linear_w(d_model, d_model),
        'merge': pg.linear_w(d_model, d_model),
        'mlp1': pg.linear_w(2 * d_model, 2 * d_model),
        'mlp2': pg.linear_w(2 * d_model, d_model),
    }


def make_effdw(pg, cin):
    """EfficientDWConv3d (square=3, band=3) folded into ONE full-channel depthwise 3x3x3
    kernel: identity channels -> center-tap delta, band branches zero-embedded."""
    gc = int(cin * 0.125)
    cid = cin - 4 * gc
    w_htw, b_htw = pg.dw3d(3, 3, 3, gc)
    w_wd, b_wd = pg.dw3d(1, 3, 3, gc)
    w_hd, b_hd = pg.dw3d(3, 1, 3, gc)
    w_hw, b_hw = pg.dw3d(3, 3, 1, gc)
    w = jnp.zeros((3, 3, 3, cin), jnp.float32)
    b = jnp.zeros((cin,), jnp.float32)
    w = w.at[1, 1, 1, :cid].set(1.0)
    c0 = cid
    w = w.at[:, :, :, c0:c0 + gc].set(w_htw)
    b = b.at[c0:c0 + gc].set(b_htw)
    c0 += gc
    w = w.at[1, :, :, c0:c0 + gc].set(w_wd[0])
    b = b.at[c0:c0 + gc].set(b_wd)
    c0 += gc
    w = w.at[:, 1, :, c0:c0 + gc].set(w_hd[:, 0])
    b = b.at[c0:c0 + gc].set(b_hd)
    c0 += gc
    w = w.at[:, :, 1, c0:c0 + gc].set(w_hw[:, :, 0])
    b = b.at[c0:c0 + gc].set(b_hw)
    return {'w': w, 'b': b}


def make_convbn3d_dw(pg, cin, cout):
    # TODO(synk): convbn_3d_dw assumed = depthwise 3x3x3 conv + 1x1x1 pointwise conv + BN3d
    return {'dw': pg.dw3d(3, 3, 3, cin)[0],
            'pw': pg.conv3d(1, 1, 1, cin, cout).reshape(cin, cout)}


def make_hourglass(pg, c):
    return {
        'conv1': make_convbn3d_dw(pg, c, 2 * c),
        'conv2': make_effdw(pg, 2 * c),
        'conv3': make_convbn3d_dw(pg, 2 * c, 4 * c),
        'conv4': make_effdw(pg, 4 * c),
        'conv5': pg.conv3d(3, 3, 3, 4 * c, 2 * c),   # used as ConvTranspose weight (Cin,Cout last)
        'conv6': pg.conv3d(3, 3, 3, 2 * c, c),
        'redir1': pg.conv3d(1, 1, 1, c, c),
        'redir2': pg.conv3d(1, 1, 1, 2 * c, 2 * c),
    }


def make_params():
    pg = ParamGen(0)
    P = {}
    P['fe'] = make_feature_extraction(pg)
    P['self_att'] = make_loftr_layer(pg)
    P['cross_att'] = make_loftr_layer(pg)
    P['dres'] = [pg.conv2d(3, 3, 320, 128), pg.conv2d(3, 3, 128, 128)]
    P['concatconv'] = {'c1': pg.conv2d(3, 3, 320, 128), 'c2': pg.conv2d(1, 1, 128, 32)}
    P['flow_attn'] = {'qw': pg.linear_w(128, 128), 'qb': jnp.zeros((128,), jnp.float32),
                      'kw': pg.linear_w(128, 128), 'kb': jnp.zeros((128,), jnp.float32)}
    P['dres0'] = {'dw': make_convbn3d_dw(pg, 65, 32), 'eff': make_effdw(pg, 32)}
    P['dres1'] = {'eff1': make_effdw(pg, 32), 'eff2': make_effdw(pg, 32)}
    P['dres2'] = make_hourglass(pg, 32)
    P['dres3'] = make_hourglass(pg, 32)
    P['dres4'] = make_hourglass(pg, 32)
    P['classif3'] = {'eff': make_effdw(pg, 32), 'conv': pg.conv3d(3, 3, 3, 32, 1)}
    return P


# ----------------------------------------------------------------------------
# Module forward functions
# ----------------------------------------------------------------------------
def basic_block_f(x, blk, stride, pad, dilation):
    ppad = dilation if dilation > 1 else pad
    out = convbn2d(x, blk['c1'], stride, ppad, dilation, relu=True)
    out = convbn2d(out, blk['c2'], 1, ppad, dilation, relu=False)
    if 'ds' in blk:
        x = conv2d(x, blk['ds'], stride, 0, 1, scale=BN_SCALE)
    return out + x


def run_layer_f(x, layer, stride, pad, dilation):
    for b, blk in enumerate(layer):
        x = basic_block_f(x, blk, stride if b == 0 else 1, pad, dilation)
    return x


def feature_extraction_f(x, p):
    y = convbn2d(x, p['first'][0], 2, 1, 1, True)
    y = convbn2d(y, p['first'][1], 1, 1, 1, True)
    y = convbn2d(y, p['first'][2], 1, 1, 1, True)
    y = run_layer_f(y, p['layer1'], 2, 1, 1)
    l2 = run_layer_f(y, p['layer2'], 2, 1, 1)
    l3 = run_layer_f(l2, p['layer3'], 2, 1, 1)
    l4 = run_layer_f(l3, p['layer4'], 1, 1, 2)
    # PyTorch resizes to (min(H2, W2), W2), which is only shape-consistent when W2 >= H2;
    # resize to l2's own (H2, W2) so the channel concat is always valid.
    h_t, w_t = l2.shape[1], l2.shape[2]
    l3 = resize_bilinear(l3, (h_t, w_t), align_corners=True)
    l4 = resize_bilinear(l4, (h_t, w_t), align_corners=True)
    return jnp.concatenate([l2.astype(jnp.float32), l3.astype(jnp.float32),
                            l4.astype(jnp.float32)], axis=-1)


def pos_encoding_sine(d_model, H, W):
    y_pos = jnp.cumsum(jnp.ones((H, W), jnp.float32), axis=0)
    x_pos = jnp.cumsum(jnp.ones((H, W), jnp.float32), axis=1)
    div = jnp.exp(jnp.arange(0, d_model // 2, 2, dtype=jnp.float32)
                  * (-math.log(10000.0) / (d_model // 2)))
    pe = jnp.zeros((H, W, d_model), jnp.float32)
    pe = pe.at[:, :, 0::4].set(jnp.sin(x_pos[..., None] * div))
    pe = pe.at[:, :, 1::4].set(jnp.cos(x_pos[..., None] * div))
    pe = pe.at[:, :, 2::4].set(jnp.sin(y_pos[..., None] * div))
    pe = pe.at[:, :, 3::4].set(jnp.cos(y_pos[..., None] * div))
    return pe


def _layernorm(x, eps=1e-5):
    m = jnp.mean(x, axis=-1, keepdims=True)
    v = jnp.var(x, axis=-1, keepdims=True)
    return (x - m) / jnp.sqrt(v + eps)


def _mm_bld(x, w):
    B, L, C = x.shape
    return pallas_matmul(x.reshape(B * L, C), w).reshape(B, L, -1)


def loftr_layer_f(x, source, p):
    B, L, C = x.shape
    H = p['nhead']
    Dh = C // H
    q = _mm_bld(x, p['q']).reshape(B, L, H, Dh)
    k = _mm_bld(source, p['k']).reshape(B, L, H, Dh)
    v = _mm_bld(source, p['v']).reshape(B, L, H, Dh)
    q = jax.nn.elu(q) + 1.0
    k = jax.nn.elu(k) + 1.0
    v_len = v.shape[1]
    v = v / v_len
    KV = jnp.einsum('nshd,nshv->nhdv', k, v)
    Z = 1.0 / (jnp.einsum('nlhd,nhd->nlh', q, jnp.sum(k, axis=1)) + 1e-6)
    msg = jnp.einsum('nlhd,nhdv,nlh->nlhv', q, KV, Z) * v_len
    msg = _mm_bld(msg.reshape(B, L, C), p['merge'])
    msg = _layernorm(msg)
    msg = _mm_bld(jnp.concatenate([x, msg], axis=-1), p['mlp1'])
    msg = jnp.maximum(msg, 0.0)
    msg = _mm_bld(msg, p['mlp2'])
    msg = _layernorm(msg)
    return x + msg


def effdw_f(x, p, bn=False, relu=False):
    w, b = p['w'], p['b']
    if bn:
        w = w * BN_SCALE
        b = b * BN_SCALE
    return dwconv3d_fused(x, w, b, relu=relu)


def convbn_3d_dw_f(x, p, stride, relu):
    cin = x.shape[-1]
    # TODO(synk): the stride-2 case still computes the depthwise at full resolution then
    # subsamples; a strided depthwise kernel would cut 8x MACs on hourglass conv1/conv3.
    y = dwconv3d_fused(x, p['dw'], jnp.zeros((cin,), jnp.float32), relu=False)
    if stride == 2:
        y = y[:, ::2, ::2, ::2, :]
    B, D, H, W, C = y.shape
    out = pallas_matmul(y.reshape(-1, C), p['pw'], BN_SCALE, None, relu, jnp.bfloat16)
    return out.reshape(B, D, H, W, p['pw'].shape[-1])


def hourglass_f(x, p):
    c1 = convbn_3d_dw_f(x, p['conv1'], stride=2, relu=True)
    c2 = effdw_f(c1, p['conv2'], bn=True, relu=True)
    c3 = convbn_3d_dw_f(c2, p['conv3'], stride=2, relu=True)
    c4 = effdw_f(c3, p['conv4'], bn=True, relu=True)
    c5t = conv_transpose3d(c4, p['conv5'], scale=BN_SCALE, out_dtype=jnp.bfloat16)
    r2 = conv3d_1x1(c2, p['redir2'], scale=BN_SCALE, out_dtype=jnp.bfloat16)
    c5 = jnp.maximum(c5t + r2, 0)
    c6t = conv_transpose3d(c5, p['conv6'], scale=BN_SCALE, out_dtype=jnp.bfloat16)
    r1 = conv3d_1x1(x, p['redir1'], scale=BN_SCALE, out_dtype=jnp.bfloat16)
    return jnp.maximum(c6t + r1, 0)


def dres_f(x, p):
    y = convbn2d(x, p[0], 1, 1, 1, True)
    return convbn2d(y, p[1], 1, 1, 1, True)


def concatconv_f(x, p):
    y = convbn2d(x, p['c1'], 1, 1, 1, True)
    B, H, W, C = y.shape
    out = pallas_matmul(y.reshape(-1, C), p['c2'].reshape(C, -1), out_dtype=jnp.bfloat16)
    return out.reshape(B, H, W, -1)


def global_corr_softmax_stereo(f0, f1):
    B, H, W, C = f0.shape
    scale = 1.0 / math.sqrt(C)
    f0b = (f0 * scale).astype(jnp.bfloat16)
    f1b = f1.astype(jnp.bfloat16)
    # Correlation produced directly in the (B, x_r, H, x_l) layout the regression kernel
    # reads; the x_r <= x_l validity mask is fused into the regression kernel (masked=True).
    corr = jnp.einsum('bhwc,bhvc->bvhw', f0b, f1b)
    correspondence = softmax_expectation(corr, masked=True)      # (B, H, W) expected x_r
    v_idx = jnp.arange(W, dtype=jnp.float32)
    return v_idx[None, None, :] - correspondence


def gpdfnet_forward(left_nchw, right_nchw, P, maxdisp):
    assert maxdisp % 4 == 0
    left = jnp.transpose(left_nchw, (0, 2, 3, 1))
    right = jnp.transpose(right_nchw, (0, 2, 3, 1))
    Hl, Wl = left.shape[1], left.shape[2]

    fl_c = feature_extraction_f(left, P['fe'])
    fr_c = feature_extraction_f(right, P['fe'])
    B, Hf, Wf, C = fl_c.shape

    pe = pos_encoding_sine(320, Hf, Wf)
    fl = (fl_c + pe[None]).reshape(B, Hf * Wf, C)
    fr = (fr_c + pe[None]).reshape(B, Hf * Wf, C)
    fl = loftr_layer_f(fl, fl, P['self_att'])
    fr = loftr_layer_f(fr, fr, P['self_att'])
    fl = loftr_layer_f(fl, fr, P['cross_att'])
    fr = loftr_layer_f(fr, fl, P['cross_att'])
    fl_t = fl.reshape(B, Hf, Wf, C)
    fr_t = fr.reshape(B, Hf, Wf, C)
    fl_t = resize_bilinear(fl_t, (2 * Hf, 2 * Wf), align_corners=True) * 2.0
    fr_t = resize_bilinear(fr_t, (2 * Hf, 2 * Wf), align_corners=True) * 2.0

    features0 = dres_f(fl_t, P['dres'])
    cl = concatconv_f(fl_t, P['concatconv'])
    cr = concatconv_f(fr_t, P['concatconv'])

    disp_pred = jnp.maximum(global_corr_softmax_stereo(fl_t, fr_t), 0.0)
    disp_pred = flow_attn_f(features0, disp_pred, P['flow_attn'])

    D4 = maxdisp // 4
    dfvol = build_df_concat_volume(cl, cr, disp_pred, D4)        # (B, D4, 2Hf, 2Wf, 65) bf16

    cost0 = convbn_3d_dw_f(dfvol, P['dres0']['dw'], stride=1, relu=True)
    cost0 = effdw_f(cost0, P['dres0']['eff'], relu=True)
    d1 = effdw_f(cost0, P['dres1']['eff1'], relu=True)
    d1 = effdw_f(d1, P['dres1']['eff2'], relu=False)
    cost0 = d1 + cost0

    out1 = hourglass_f(cost0, P['dres2'])
    out2 = hourglass_f(out1, P['dres3'])
    out3 = hourglass_f(out2, P['dres4'])

    c3 = effdw_f(out3, P['classif3']['eff'], relu=True)
    cost3 = conv3d_c1(c3, P['classif3']['conv'][..., 0])          # (B, D4, H/4, W/4)
    cost3 = resize_trilinear(cost3, (maxdisp, Hl, Wl), align_corners=False)
    pred3 = softmax_expectation(cost3)                            # (B, Hl, Wl)
    return pred3


if __name__ == "__main__":
    key = jax.random.PRNGKey(0)
    k1, k2 = jax.random.split(key)
    left = jax.random.normal(k1, (1, 3, 32, 64), jnp.float32)    # NCHW, like the PyTorch module
    right = jax.random.normal(k2, (1, 3, 32, 64), jnp.float32)
    params = make_params()
    maxdisp = 16
    pred3 = gpdfnet_forward(left, right, params, maxdisp)
    pred3 = jax.block_until_ready(pred3)
    assert pred3.shape == (1, 32, 64)
    assert bool(jnp.all(jnp.isfinite(pred3)))
    print("KERNEL_OK")
</pallas_src>

<mosaic_0001>
module attributes {stable_mosaic.version = 11 : i64} {
  func.func @_mm_kernel(%arg0: i32, %arg1: i32, %arg2: i32, %arg3: memref<512x128xbf16, #tpu.memory_space<vmem>>, %arg4: memref<128x128xbf16, #tpu.memory_space<vmem>>, %arg5: memref<1x128xf32, #tpu.memory_space<vmem>>, %arg6: memref<512x128xbf16, #tpu.memory_space<vmem>>, %arg7: memref<512x128xf32, #tpu.memory_space<vmem>>) attributes {dimension_semantics = [#tpu.dimension_semantics<parallel>, #tpu.dimension_semantics<parallel>, #tpu.dimension_semantics<arbitrary>], iteration_bounds = array<i64: 1, 1, 1>, scalar_prefetch = 0 : i64, scratch_operands = 1 : i64, tpu.core_type = #tpu.core_type<tc>, window_params = [{transform_indices = @transform_0, window_bounds = array<i64: 512, 128>}, {transform_indices = @transform_1, window_bounds = array<i64: 128, 128>}, {transform_indices = @transform_2, window_bounds = array<i64: 1, 128>}, {transform_indices = @transform_3, window_bounds = array<i64: 512, 128>}]} {
    %c0_i32 = arith.constant 0 : i32
    %0 = arith.cmpi eq, %arg2, %c0_i32 : i32
    %1 = arith.extui %0 : i1 to i32
    %c0_i32_0 = arith.constant 0 : i32
    %2 = arith.cmpi ne, %1, %c0_i32_0 : i32
    scf.if %2 {
      %cst_10 = arith.constant 0.000000e+00 : f32
      %12 = vector.broadcast %cst_10 : f32 to vector<512x128xf32>
      %c0_11 = arith.constant 0 : index
      %c0_12 = arith.constant 0 : index
      %13 = vector.load %arg7[%c0_11, %c0_12] : memref<512x128xf32, #tpu.memory_space<vmem>>, vector<512x128xf32>
      tpu.vector_store %arg7[%c0_11, %c0_12], %12 {strides = array<i32>} : memref<512x128xf32, #tpu.memory_space<vmem>>, vector<512x128xf32>,
    } else {
    }
    %c0 = arith.constant 0 : index
    %c0_1 = arith.constant 0 : index
    %3 = vector.load %arg7[%c0, %c0_1] : memref<512x128xf32, #tpu.memory_space<vmem>>, vector<512x128xf32>
    %c0_2 = arith.constant 0 : index
    %c0_3 = arith.constant 0 : index
    %4 = vector.load %arg3[%c0_2, %c0_3] : memref<512x128xbf16, #tpu.memory_space<vmem>>, vector<512x128xbf16>
    %c0_4 = arith.constant 0 : index
    %c0_5 = arith.constant 0 : index
    %5 = vector.load %arg4[%c0_4, %c0_5] : memref<128x128xbf16, #tpu.memory_space<vmem>>, vector<128x128xbf16>
    %cst = arith.constant dense<0.000000e+00> : vector<512x128xf32>
    %6 = tpu.matmul %4, %5, %cst {dimension_numbers = #tpu.dot_dimension_numbers<[1], [0], [0], [1], [0, 0, 1, 1], [], []>} : vector<512x128xbf16>, vector<128x128xbf16>, vector<512x128xf32> -> vector<512x128xf32>
    %7 = arith.addf %3, %6 : vector<512x128xf32>
    %c0_6 = arith.constant 0 : index
    %c0_7 = arith.constant 0 : index
    %8 = vector.load %arg7[%c0_6, %c0_7] : memref<512x128xf32, #tpu.memory_space<vmem>>, vector<512x128xf32>
    tpu.vector_store %arg7[%c0_6, %c0_7], %7 {strides = array<i32>} : memref<512x128xf32, #tpu.memory_space<vmem>>, vector<512x128xf32>,
    %c0_i32_8 = arith.constant 0 : i32
    %9 = arith.cmpi eq, %arg2, %c0_i32_8 : i32
    %10 = arith.extui %9 : i1 to i32
    %c0_i32_9 = arith.constant 0 : i32
    %11 = arith.cmpi ne, %10, %c0_i32_9 : i32
    scf.if %11 {
      %c0_10 = arith.constant 0 : index
      %c0_11 = arith.constant 0 : index
      %12 = vector.load %arg7[%c0_10, %c0_11] : memref<512x128xf32, #tpu.memory_space<vmem>>, vector<512x128xf32>
      %c0_12 = arith.constant 0 : index
      %c0_13 = arith.constant 0 : index
      %13 = vector.load %arg5[%c0_12, %c0_13] : memref<1x128xf32, #tpu.memory_space<vmem>>, vector<1x128xf32>
      %14 = vector.broadcast %13 : vector<1x128xf32> to vector<512x128xf32>
      %15 = arith.addf %12, %14 : vector<512x128xf32>
      %cst_14 = arith.constant 0.000000e+00 : f32
      %16 = vector.broadcast %cst_14 : f32 to vector<512x128xf32>
      %17 = arith.maximumf %15, %16 : vector<512x128xf32>
      %18 = arith.truncf %17 : vector<512x128xf32> to vector<512x128xbf16>
      %c0_15 = arith.constant 0 : index
      %c0_16 = arith.constant 0 : index
      %19 = vector.load %arg6[%c0_15, %c0_16] : memref<512x128xbf16, #tpu.memory_space<vmem>>, vector<512x128xbf16>
      tpu.vector_store %arg6[%c0_15, %c0_16], %18 {strides = array<i32>} : memref<512x128xbf16, #tpu.memory_space<vmem>>, vector<512x128xbf16>,
    } else {
    }
    return
  }
  func.func @transform_0(%arg0: i32, %arg1: i32, %arg2: i32) -> (i32, i32) {
    %c0_i32 = arith.constant 0 : i32
    return %arg0, %arg2 : i32, i32
  }
  func.func @transform_1(%arg0: i32, %arg1: i32, %arg2: i32) -> (i32, i32) {
    %c0_i32 = arith.constant 0 : i32
    return %arg2, %arg1 : i32, i32
  }
  func.func @transform_2(%arg0: i32, %arg1: i32, %arg2: i32) -> (i32, i32) {
    %c0_i32 = arith.constant 0 : i32
    %c0_i32_0 = arith.constant 0 : i32
    return %c0_i32, %arg1 : i32, i32
  }
  func.func @transform_3(%arg0: i32, %arg1: i32, %arg2: i32) -> (i32, i32) {
    %c0_i32 = arith.constant 0 : i32
    return %arg0, %arg1 : i32, i32
  }
}

</mosaic_0001>

<llo_original>
// kernel: tpu_custom_call.1
$region0: #{tpu_custom_call.1}
  #allocation0 [shape = 'u32[]', space=smem, size = 0x4, offset = 0x4, fixed_abs, tag = 'smem constant byte address 0x4 - core index']
  #allocation1 [shape = 'u32[144,128]{1,0:T(1,128)}', space=vmem, size = 0x12000, scoped, tag = 'internal scratch']
  #allocation2 [shape = 'f32[512,128]{1,0:T(8,128)}', space=vmem, size = 0x40000, scoped, tag = 'scratch operand']
  %s0 = inlined_call_operand.hbm [shape: bf16[512,128], index: 0, kind: input, shape index: {}]
  %s1 = inlined_call_operand.hbm [shape: bf16[128,128], index: 1, kind: input, shape index: {}]
  %s2 = inlined_call_operand.vmem [shape: f32[1,128], index: 2, kind: input, shape index: {}]
  %s3 = inlined_call_operand.hbm [shape: bf16[512,128], index: 3, kind: output, shape index: {}]
  %s4 = sld [smem:[#allocation0]]
  $region38: #{tpu_custom_call.1} parent=0
    _
  %s6 = ssub.s32 1, %s4
  %s7 = scalar_select 0, %s6, %s4
  $region1: #{tpu_custom_call.1} parent=0
    #allocation3 [shape = 'u8[131072]{0}', space=vmem, size = 0x20000, scoped, tag = 'input window, operand 0, single buffered']
    #allocation4 [shape = 's32[1]{0}', space=sflag, size = 0x4, scoped, tag = 'scoped memory for tpu_custom_call.1']
    #allocation5 [shape = 's32[1]{0}', space=sflag, size = 0x4, scoped, tag = 'scoped memory for tpu_custom_call.1']
    #allocation6 [shape = 'u8[32768]{0}', space=vmem, size = 0x8000, scoped, tag = 'input window, operand 1, single buffered']
    #allocation7 [shape = 's32[1]{0}', space=sflag, size = 0x4, scoped, tag = 'scoped memory for tpu_custom_call.1']
    #allocation8 [shape = 'u8[131072]{0}', space=vmem, size = 0x20000, scoped, tag = 'output window, operand 0, single buffered']
    %8 = vsyncpa [#allocation4], 0
    %9 = vsyncpa [#allocation7], 0
    %10 = vsyncpa [#allocation5], 0
    // Predicated region
    $region2: #{tpu_custom_call.1} parent=1 // pred_check
      _
    $region3: #{tpu_custom_call.1} parent=1 // pred_check_branch
      %12 = sbr.rel (0) target = $region5
    $region4: #{tpu_custom_call.1} parent=1 // pred_region
      %s14 = ssub.s32 4096, 4096
      %15 = vsyncadd [#allocation4], %s14
      %s16 = sshll.u32 [#allocation3], 4
      %s17 = int_to_ptr.vmem [resolvable:$true] %s16
      %22 = dma.hbm_to_vmem [thread:$0]  %s0, 4096, %s17, [#allocation4], 64, 64, 4
    $region5: #{tpu_custom_call.1} parent=1 // pred_fallthru
      _
    // Predicated region
    $region6: #{tpu_custom_call.1} parent=1 // pred_check
      _
    $region7: #{tpu_custom_call.1} parent=1 // pred_check_branch
      %24 = sbr.rel (0) target = $region9
    $region8: #{tpu_custom_call.1} parent=1 // pred_region
      %s26 = ssub.s32 1024, 1024
      %27 = vsyncadd [#allocation7], %s26
      %s28 = sshll.u32 [#allocation6], 4
      %s29 = int_to_ptr.vmem [resolvable:$true] %s28
      %34 = dma.hbm_to_vmem [thread:$0]  %s1, 1024, %s29, [#allocation7], 64, 64, 4
    $region9: #{tpu_custom_call.1} parent=1 // pred_fallthru
      _
    // Predicated region
    $region10: #{tpu_custom_call.1} parent=1 // pred_check
      _
    $region11: #{tpu_custom_call.1} parent=1 // pred_check_branch
      %36 = sbr.rel (0) target = $region13
    $region12: #{tpu_custom_call.1} parent=1 // pred_region
      _
    $region13: #{tpu_custom_call.1} parent=1 // pred_fallthru
      _
    // Predicated region
    $region14: #{tpu_custom_call.1} parent=1 // pred_check
      _
    $region15: #{tpu_custom_call.1} parent=1 // pred_check_branch
      %38 = sbr.rel (0) target = $region17
    $region16: #{tpu_custom_call.1} parent=1 // pred_region
      %39 = dma.done [#allocation4], 4096
    $region17: #{tpu_custom_call.1} parent=1 // pred_fallthru
      _
    // Predicated region
    $region18: #{tpu_custom_call.1} parent=1 // pred_check
      _
    $region19: #{tpu_custom_call.1} parent=1 // pred_check_branch
      %41 = sbr.rel (0) target = $region21
    $region20: #{tpu_custom_call.1} parent=1 // pred_region
      %42 = dma.done [#allocation7], 1024
    $region21: #{tpu_custom_call.1} parent=1 // pred_fallthru
      _
    %p44 = scmp.eq.s32.totalorder 0, 0
    // Predicated region
    $region22: #{tpu_custom_call.1} parent=1 // pred_check
      %p45 = pneg %p44
    $region23: #{tpu_custom_call.1} parent=1 // pred_check_branch
      %47 = sbr.rel (%p45) target = $region25
    $region24: #{tpu_custom_call.1} parent=1 // pred_region
      %48 = vst [vmem:[#allocation2] sm:$0xff] 0.0
      %49 = vst [vmem:[#allocation2 + $0x8] sm:$0xff] 0.0
      %50 = vst [vmem:[#allocation2 + $0x10] sm:$0xff] 0.0
      %51 = vst [vmem:[#allocation2 + $0x18] sm:$0xff] 0.0
      %52 = vst [vmem:[#allocation2 + $0x20] sm:$0xff] 0.0
      %53 = vst [vmem:[#allocation2 + $0x28] sm:$0xff] 0.0
      %54 = vst [vmem:[#allocation2 + $0x30] sm:$0xff] 0.0
      %55 = vst [vmem:[#allocation2 + $0x38] sm:$0xff] 0.0
      %56 = vst [vmem:[#allocation2 + $0x40] sm:$0xff] 0.0
      %57 = vst [vmem:[#allocation2 + $0x48] sm:$0xff] 0.0
      %58 = vst [vmem:[#allocation2 + $0x50] sm:$0xff] 0.0
      %59 = vst [vmem:[#allocation2 + $0x58] sm:$0xff] 0.0
      %60 = vst [vmem:[#allocation2 + $0x60] sm:$0xff] 0.0
      %61 = vst [vmem:[#allocation2 + $0x68] sm:$0xff] 0.0
      %62 = vst [vmem:[#allocation2 + $0x70] sm:$0xff] 0.0
      %63 = vst [vmem:[#allocation2 + $0x78] sm:$0xff] 0.0
      %64 = vst [vmem:[#allocation2 + $0x80] sm:$0xff] 0.0
      %65 = vst [vmem:[#allocation2 + $0x88] sm:$0xff] 0.0
      %66 = vst [vmem:[#allocation2 + $0x90] sm:$0xff] 0.0
      %67 = vst [vmem:[#allocation2 + $0x98] sm:$0xff] 0.0
      %68 = vst [vmem:[#allocation2 + $0xa0] sm:$0xff] 0.0
      %69 = vst [vmem:[#allocation2 + $0xa8] sm:$0xff] 0.0
      %70 = vst [vmem:[#allocation2 + $0xb0] sm:$0xff] 0.0
      %71 = vst [vmem:[#allocation2 + $0xb8] sm:$0xff] 0.0
      %72 = vst [vmem:[#allocation2 + $0xc0] sm:$0xff] 0.0
      %73 = vst [vmem:[#allocation2 + $0xc8] sm:$0xff] 0.0
      %74 = vst [vmem:[#allocation2 + $0xd0] sm:$0xff] 0.0
      %75 = vst [vmem:[#allocation2 + $0xd8] sm:$0xff] 0.0
      %76 = vst [vmem:[#allocation2 + $0xe0] sm:$0xff] 0.0
      %77 = vst [vmem:[#allocation2 + $0xe8] sm:$0xff] 0.0
      %78 = vst [vmem:[#allocation2 + $0xf0] sm:$0xff] 0.0
      %79 = vst [vmem:[#allocation2 + $0xf8] sm:$0xff] 0.0
      %80 = vst [vmem:[#allocation2 + $0x100] sm:$0xff] 0.0
      %81 = vst [vmem:[#allocation2 + $0x108] sm:$0xff] 0.0
      %82 = vst [vmem:[#allocation2 + $0x110] sm:$0xff] 0.0
      %83 = vst [vmem:[#allocation2 + $0x118] sm:$0xff] 0.0
      %84 = vst [vmem:[#allocation2 + $0x120] sm:$0xff] 0.0
      %85 = vst [vmem:[#allocation2 + $0x128] sm:$0xff] 0.0
      %86 = vst [vmem:[#allocation2 + $0x130] sm:$0xff] 0.0
      %87 = vst [vmem:[#allocation2 + $0x138] sm:$0xff] 0.0
      %88 = vst [vmem:[#allocation2 + $0x140] sm:$0xff] 0.0
      %89 = vst [vmem:[#allocation2 + $0x148] sm:$0xff] 0.0
      %90 = vst [vmem:[#allocation2 + $0x150] sm:$0xff] 0.0
      %91 = vst [vmem:[#allocation2 + $0x158] sm:$0xff] 0.0
      %92 = vst [vmem:[#allocation2 + $0x160] sm:$0xff] 0.0
      %93 = vst [vmem:[#allocation2 + $0x168] sm:$0xff] 0.0
      %94 = vst [vmem:[#allocation2 + $0x170] sm:$0xff] 0.0
      %95 = vst [vmem:[#allocation2 + $0x178] sm:$0xff] 0.0
      %96 = vst [vmem:[#allocation2 + $0x180] sm:$0xff] 0.0
      %97 = vst [vmem:[#allocation2 + $0x188] sm:$0xff] 0.0
      %98 = vst [vmem:[#allocation2 + $0x190] sm:$0xff] 0.0
      %99 = vst [vmem:[#allocation2 + $0x198] sm:$0xff] 0.0
      %100 = vst [vmem:[#allocation2 + $0x1a0] sm:$0xff] 0.0
      %101 = vst [vmem:[#allocation2 + $0x1a8] sm:$0xff] 0.0
      %102 = vst [vmem:[#allocation2 + $0x1b0] sm:$0xff] 0.0
      %103 = vst [vmem:[#allocation2 + $0x1b8] sm:$0xff] 0.0
      %104 = vst [vmem:[#allocation2 + $0x1c0] sm:$0xff] 0.0
      %105 = vst [vmem:[#allocation2 + $0x1c8] sm:$0xff] 0.0
      %106 = vst [vmem:[#allocation2 + $0x1d0] sm:$0xff] 0.0
      %107 = vst [vmem:[#allocation2 + $0x1d8] sm:$0xff] 0.0
      %108 = vst [vmem:[#allocation2 + $0x1e0] sm:$0xff] 0.0
      %109 = vst [vmem:[#allocation2 + $0x1e8] sm:$0xff] 0.0
      %110 = vst [vmem:[#allocation2 + $0x1f0] sm:$0xff] 0.0
      %111 = vst [vmem:[#allocation2 + $0x1f8] sm:$0xff] 0.0
    $region25: #{tpu_custom_call.1} parent=1 // pred_fallthru
      _
    %v112 = vld [vmem:[#allocation2] sm:$0xff]
    %v113 = vld [vmem:[#allocation2 + $0x8] sm:$0xff]
    %v114 = vld [vmem:[#allocation2 + $0x10] sm:$0xff]
    %v115 = vld [vmem:[#allocation2 + $0x18] sm:$0xff]
    %v116 = vld [vmem:[#allocation2 + $0x20] sm:$0xff]
    %v117 = vld [vmem:[#allocation2 + $0x28] sm:$0xff]
    %v118 = vld [vmem:[#allocation2 + $0x30] sm:$0xff]
    %v119 = vld [vmem:[#allocation2 + $0x38] sm:$0xff]
    %v120 = vld [vmem:[#allocation2 + $0x40] sm:$0xff]
    %v121 = vld [vmem:[#allocation2 + $0x48] sm:$0xff]
    %v122 = vld [vmem:[#allocation2 + $0x50] sm:$0xff]
    %v123 = vld [vmem:[#allocation2 + $0x58] sm:$0xff]
    %v124 = vld [vmem:[#allocation2 + $0x60] sm:$0xff]
    %v125 = vld [vmem:[#allocation2 + $0x68] sm:$0xff]
    %v126 = vld [vmem:[#allocation2 + $0x70] sm:$0xff]
    %v127 = vld [vmem:[#allocation2 + $0x78] sm:$0xff]
    %v128 = vld [vmem:[#allocation2 + $0x80] sm:$0xff]
    %v129 = vld [vmem:[#allocation2 + $0x88] sm:$0xff]
    %v130 = vld [vmem:[#allocation2 + $0x90] sm:$0xff]
    %v131 = vld [vmem:[#allocation2 + $0x98] sm:$0xff]
    %v132 = vld [vmem:[#allocation2 + $0xa0] sm:$0xff]
    %v133 = vld [vmem:[#allocation2 + $0xa8] sm:$0xff]
    %v134 = vld [vmem:[#allocation2 + $0xb0] sm:$0xff]
    %v135 = vld [vmem:[#allocation2 + $0xb8] sm:$0xff]
    %v136 = vld [vmem:[#allocation2 + $0xc0] sm:$0xff]
    %v137 = vld [vmem:[#allocation2 + $0xc8] sm:$0xff]
    %v138 = vld [vmem:[#allocation2 + $0xd0] sm:$0xff]
    %v139 = vld [vmem:[#allocation2 + $0xd8] sm:$0xff]
    %v140 = vld [vmem:[#allocation2 + $0xe0] sm:$0xff]
    %v141 = vld [vmem:[#allocation2 + $0xe8] sm:$0xff]
    %v142 = vld [vmem:[#allocation2 + $0xf0] sm:$0xff]
    %v143 = vld [vmem:[#allocation2 + $0xf8] sm:$0xff]
    %v144 = vld [vmem:[#allocation2 + $0x100] sm:$0xff]
    %v145 = vld [vmem:[#allocation2 + $0x108] sm:$0xff]
    %v146 = vld [vmem:[#allocation2 + $0x110] sm:$0xff]
    %v147 = vld [vmem:[#allocation2 + $0x118] sm:$0xff]
    %v148 = vld [vmem:[#allocation2 + $0x120] sm:$0xff]
    %v149 = vld [vmem:[#allocation2 + $0x128] sm:$0xff]
    %v150 = vld [vmem:[#allocation2 + $0x130] sm:$0xff]
    %v151 = vld [vmem:[#allocation2 + $0x138] sm:$0xff]
    %v152 = vld [vmem:[#allocation2 + $0x140] sm:$0xff]
    %v153 = vld [vmem:[#allocation2 + $0x148] sm:$0xff]
    %v154 = vld [vmem:[#allocation2 + $0x150] sm:$0xff]
    %v155 = vld [vmem:[#allocation2 + $0x158] sm:$0xff]
    %v156 = vld [vmem:[#allocation2 + $0x160] sm:$0xff]
    %v157 = vld [vmem:[#allocation2 + $0x168] sm:$0xff]
    %v158 = vld [vmem:[#allocation2 + $0x170] sm:$0xff]
    %v159 = vld [vmem:[#allocation2 + $0x178] sm:$0xff]
    %v160 = vld [vmem:[#allocation2 + $0x180] sm:$0xff]
    %v161 = vld [vmem:[#allocation2 + $0x188] sm:$0xff]
    %v162 = vld [vmem:[#allocation2 + $0x190] sm:$0xff]
    %v163 = vld [vmem:[#allocation2 + $0x198] sm:$0xff]
    %v164 = vld [vmem:[#allocation2 + $0x1a0] sm:$0xff]
    %v165 = vld [vmem:[#allocation2 + $0x1a8] sm:$0xff]
    %v166 = vld [vmem:[#allocation2 + $0x1b0] sm:$0xff]
    %v167 = vld [vmem:[#allocation2 + $0x1b8] sm:$0xff]
    %v168 = vld [vmem:[#allocation2 + $0x1c0] sm:$0xff]
    %v169 = vld [vmem:[#allocation2 + $0x1c8] sm:$0xff]
    %v170 = vld [vmem:[#allocation2 + $0x1d0] sm:$0xff]
    %v171 = vld [vmem:[#allocation2 + $0x1d8] sm:$0xff]
    %v172 = vld [vmem:[#allocation2 + $0x1e0] sm:$0xff]
    %v173 = vld [vmem:[#allocation2 + $0x1e8] sm:$0xff]
    %v174 = vld [vmem:[#allocation2 + $0x1f0] sm:$0xff]
    %v175 = vld [vmem:[#allocation2 + $0x1f8] sm:$0xff]
    %v176 = vld [vmem:[#allocation3] sm:$0xf]
    %v177 = vld [vmem:[#allocation3 + $0x4] sm:$0xf]
    %v178 = vld [vmem:[#allocation3 + $0x8] sm:$0xf]
    %v179 = vld [vmem:[#allocation3 + $0xc] sm:$0xf]
    %v180 = vld [vmem:[#allocation3 + $0x10] sm:$0xf]
    %v181 = vld [vmem:[#allocation3 + $0x14] sm:$0xf]
    %v182 = vld [vmem:[#allocation3 + $0x18] sm:$0xf]
    %v183 = vld [vmem:[#allocation3 + $0x1c] sm:$0xf]
    %v184 = vld [vmem:[#allocation3 + $0x20] sm:$0xf]
    %v185 = vld [vmem:[#allocation3 + $0x24] sm:$0xf]
    %v186 = vld [vmem:[#allocation3 + $0x28] sm:$0xf]
    %v187 = vld [vmem:[#allocation3 + $0x2c] sm:$0xf]
    %v188 = vld [vmem:[#allocation3 + $0x30] sm:$0xf]
    %v189 = vld [vmem:[#allocation3 + $0x34] sm:$0xf]
    %v190 = vld [vmem:[#allocation3 + $0x38] sm:$0xf]
    %v191 = vld [vmem:[#allocation3 + $0x3c] sm:$0xf]
    %v192 = vld [vmem:[#allocation3 + $0x40] sm:$0xf]
    %v193 = vld [vmem:[#allocation3 + $0x44] sm:$0xf]
    %v194 = vld [vmem:[#allocation3 + $0x48] sm:$0xf]
    %v195 = vld [vmem:[#allocation3 + $0x4c] sm:$0xf]
    %v196 = vld [vmem:[#allocation3 + $0x50] sm:$0xf]
    %v197 = vld [vmem:[#allocation3 + $0x54] sm:$0xf]
    %v198 = vld [vmem:[#allocation3 + $0x58] sm:$0xf]
    %v199 = vld [vmem:[#allocation3 + $0x5c] sm:$0xf]
    %v200 = vld [vmem:[#allocation3 + $0x60] sm:$0xf]
    %v201 = vld [vmem:[#allocation3 + $0x64] sm:$0xf]
    %v202 = vld [vmem:[#allocation3 + $0x68] sm:$0xf]
    %v203 = vld [vmem:[#allocation3 + $0x6c] sm:$0xf]
    %v204 = vld [vmem:[#allocation3 + $0x70] sm:$0xf]
    %v205 = vld [vmem:[#allocation3 + $0x74] sm:$0xf]
    %v206 = vld [vmem:[#allocation3 + $0x78] sm:$0xf]
    %v207 = vld [vmem:[#allocation3 + $0x7c] sm:$0xf]
    %v208 = vld [vmem:[#allocation3 + $0x80] sm:$0xf]
    %v209 = vld [vmem:[#allocation3 + $0x84] sm:$0xf]
    %v210 = vld [vmem:[#allocation3 + $0x88] sm:$0xf]
    %v211 = vld [vmem:[#allocation3 + $0x8c] sm:$0xf]
    %v212 = vld [vmem:[#allocation3 + $0x90] sm:$0xf]
    %v213 = vld [vmem:[#allocation3 + $0x94] sm:$0xf]
    %v214 = vld [vmem:[#allocation3 + $0x98] sm:$0xf]
    %v215 = vld [vmem:[#allocation3 + $0x9c] sm:$0xf]
    %v216 = vld [vmem:[#allocation3 + $0xa0] sm:$0xf]
    %v217 = vld [vmem:[#allocation3 + $0xa4] sm:$0xf]
    %v218 = vld [vmem:[#allocation3 + $0xa8] sm:$0xf]
    %v219 = vld [vmem:[#allocation3 + $0xac] sm:$0xf]
    %v220 = vld [vmem:[#allocation3 + $0xb0] sm:$0xf]
    %v221 = vld [vmem:[#allocation3 + $0xb4] sm:$0xf]
    %v222 = vld [vmem:[#allocation3 + $0xb8] sm:$0xf]
    %v223 = vld [vmem:[#allocation3 + $0xbc] sm:$0xf]
    %v224 = vld [vmem:[#allocation3 + $0xc0] sm:$0xf]
    %v225 = vld [vmem:[#allocation3 + $0xc4] sm:$0xf]
    %v226 = vld [vmem:[#allocation3 + $0xc8] sm:$0xf]
    %v227 = vld [vmem:[#allocation3 + $0xcc] sm:$0xf]
    %v228 = vld [vmem:[#allocation3 + $0xd0] sm:$0xf]
    %v229 = vld [vmem:[#allocation3 + $0xd4] sm:$0xf]
    %v230 = vld [vmem:[#allocation3 + $0xd8] sm:$0xf]
    %v231 = vld [vmem:[#allocation3 + $0xdc] sm:$0xf]
    %v232 = vld [vmem:[#allocation3 + $0xe0] sm:$0xf]
    %v233 = vld [vmem:[#allocation3 + $0xe4] sm:$0xf]
    %v234 = vld [vmem:[#allocation3 + $0xe8] sm:$0xf]
    %v235 = vld [vmem:[#allocation3 + $0xec] sm:$0xf]
    %v236 = vld [vmem:[#allocation3 + $0xf0] sm:$0xf]
    %v237 = vld [vmem:[#allocation3 + $0xf4] sm:$0xf]
    %v238 = vld [vmem:[#allocation3 + $0xf8] sm:$0xf]
    %v239 = vld [vmem:[#allocation3 + $0xfc] sm:$0xf]
    %v240 = vld [vmem:[#allocation6] sm:$0xf]
    %v241 = vld [vmem:[#allocation6 + $0x4] sm:$0xf]
    %v242 = vld [vmem:[#allocation6 + $0x8] sm:$0xf]
    %v243 = vld [vmem:[#allocation6 + $0xc] sm:$0xf]
    %v244 = vld [vmem:[#allocation6 + $0x10] sm:$0xf]
    %v245 = vld [vmem:[#allocation6 + $0x14] sm:$0xf]
    %v246 = vld [vmem:[#allocation6 + $0x18] sm:$0xf]
    %v247 = vld [vmem:[#allocation6 + $0x1c] sm:$0xf]
    %v248 = vld [vmem:[#allocation6 + $0x20] sm:$0xf]
    %v249 = vld [vmem:[#allocation6 + $0x24] sm:$0xf]
    %v250 = vld [vmem:[#allocation6 + $0x28] sm:$0xf]
    %v251 = vld [vmem:[#allocation6 + $0x2c] sm:$0xf]
    %v252 = vld [vmem:[#allocation6 + $0x30] sm:$0xf]
    %v253 = vld [vmem:[#allocation6 + $0x34] sm:$0xf]
    %v254 = vld [vmem:[#allocation6 + $0x38] sm:$0xf]
    %v255 = vld [vmem:[#allocation6 + $0x3c] sm:$0xf]
    %v320 = vunpack.c.l.b16 %v176
    %v321 = vunpack.c.l.b16 %v177
    %v322 = vunpack.c.l.b16 %v178
    %v323 = vunpack.c.l.b16 %v179
    %v324 = vunpack.c.l.b16 %v180
    %v325 = vunpack.c.l.b16 %v181
    %v326 = vunpack.c.l.b16 %v182
    %v327 = vunpack.c.l.b16 %v183
    %v328 = vunpack.c.l.b16 %v184
    %v329 = vunpack.c.l.b16 %v185
    %v330 = vunpack.c.l.b16 %v186
    %v331 = vunpack.c.l.b16 %v187
    %v332 = vunpack.c.l.b16 %v188
    %v333 = vunpack.c.l.b16 %v189
    %v334 = vunpack.c.l.b16 %v190
    %v335 = vunpack.c.l.b16 %v191
    %v336 = vunpack.c.l.b16 %v192
    %v337 = vunpack.c.l.b16 %v193
    %v338 = vunpack.c.l.b16 %v194
    %v339 = vunpack.c.l.b16 %v195
    %v340 = vunpack.c.l.b16 %v196
    %v341 = vunpack.c.l.b16 %v197
    %v342 = vunpack.c.l.b16 %v198
    %v343 = vunpack.c.l.b16 %v199
    %v344 = vunpack.c.l.b16 %v200
    %v345 = vunpack.c.l.b16 %v201
    %v346 = vunpack.c.l.b16 %v202
    %v347 = vunpack.c.l.b16 %v203
    %v348 = vunpack.c.l.b16 %v204
    %v349 = vunpack.c.l.b16 %v205
    %v350 = vunpack.c.l.b16 %v206
    %v351 = vunpack.c.l.b16 %v207
    %v352 = vunpack.c.l.b16 %v208
    %v353 = vunpack.c.l.b16 %v209
    %v354 = vunpack.c.l.b16 %v210
    %v355 = vunpack.c.l.b16 %v211
    %v356 = vunpack.c.l.b16 %v212
    %v357 = vunpack.c.l.b16 %v213
    %v358 = vunpack.c.l.b16 %v214
    %v359 = vunpack.c.l.b16 %v215
    %v360 = vunpack.c.l.b16 %v216
    %v361 = vunpack.c.l.b16 %v217
    %v362 = vunpack.c.l.b16 %v218
    %v363 = vunpack.c.l.b16 %v219
    %v364 = vunpack.c.l.b16 %v220
    %v365 = vunpack.c.l.b16 %v221
    %v366 = vunpack.c.l.b16 %v222
    %v367 = vunpack.c.l.b16 %v223
    %v368 = vunpack.c.l.b16 %v224
    %v369 = vunpack.c.l.b16 %v225
    %v370 = vunpack.c.l.b16 %v226
    %v371 = vunpack.c.l.b16 %v227
    %v372 = vunpack.c.l.b16 %v228
    %v373 = vunpack.c.l.b16 %v229
    %v374 = vunpack.c.l.b16 %v230
    %v375 = vunpack.c.l.b16 %v231
    %v376 = vunpack.c.l.b16 %v232
    %v377 = vunpack.c.l.b16 %v233
    %v378 = vunpack.c.l.b16 %v234
    %v379 = vunpack.c.l.b16 %v235
    %v380 = vunpack.c.l.b16 %v236
    %v381 = vunpack.c.l.b16 %v237
    %v382 = vunpack.c.l.b16 %v238
    %v383 = vunpack.c.l.b16 %v239
    %v384 = vpack.c.b16 %v321, %v320
    %v385 = vpack.c.b16 %v323, %v322
    %v386 = vpack.c.b16 %v325, %v324
    %v387 = vpack.c.b16 %v327, %v326
    %v388 = vpack.c.b16 %v329, %v328
    %v389 = vpack.c.b16 %v331, %v330
    %v390 = vpack.c.b16 %v333, %v332
    %v391 = vpack.c.b16 %v335, %v334
    %v392 = vpack.c.b16 %v337, %v336
    %v393 = vpack.c.b16 %v339, %v338
    %v394 = vpack.c.b16 %v341, %v340
    %v395 = vpack.c.b16 %v343, %v342
    %v396 = vpack.c.b16 %v345, %v344
    %v397 = vpack.c.b16 %v347, %v346
    %v398 = vpack.c.b16 %v349, %v348
    %v399 = vpack.c.b16 %v351, %v350
    %v400 = vpack.c.b16 %v353, %v352
    %v401 = vpack.c.b16 %v355, %v354
    %v402 = vpack.c.b16 %v357, %v356
    %v403 = vpack.c.b16 %v359, %v358
    %v404 = vpack.c.b16 %v361, %v360
    %v405 = vpack.c.b16 %v363, %v362
    %v406 = vpack.c.b16 %v365, %v364
    %v407 = vpack.c.b16 %v367, %v366
    %v408 = vpack.c.b16 %v369, %v368
    %v409 = vpack.c.b16 %v371, %v370
    %v410 = vpack.c.b16 %v373, %v372
    %v411 = vpack.c.b16 %v375, %v374
    %v412 = vpack.c.b16 %v377, %v376
    %v413 = vpack.c.b16 %v379, %v378
    %v414 = vpack.c.b16 %v381, %v380
    %v415 = vpack.c.b16 %v383, %v382
    %v464 = vunpack.c.l.b16 %v240
    %v465 = vunpack.c.l.b16 %v241
    %v466 = vunpack.c.l.b16 %v242
    %v467 = vunpack.c.l.b16 %v243
    %v468 = vunpack.c.l.b16 %v244
    %v469 = vunpack.c.l.b16 %v245
    %v470 = vunpack.c.l.b16 %v246
    %v471 = vunpack.c.l.b16 %v247
    %v472 = vunpack.c.l.b16 %v248
    %v473 = vunpack.c.l.b16 %v249
    %v474 = vunpack.c.l.b16 %v250
    %v475 = vunpack.c.l.b16 %v251
    %v476 = vunpack.c.l.b16 %v252
    %v477 = vunpack.c.l.b16 %v253
    %v478 = vunpack.c.l.b16 %v254
    %v479 = vunpack.c.l.b16 %v255
    %v480 = vpack.c.b16 %v465, %v464
    %v481 = vpack.c.b16 %v467, %v466
    %v482 = vpack.c.b16 %v469, %v468
    %v483 = vpack.c.b16 %v471, %v470
    %v484 = vpack.c.b16 %v473, %v472
    %v485 = vpack.c.b16 %v475, %v474
    %v486 = vpack.c.b16 %v477, %v476
    %v487 = vpack.c.b16 %v479, %v478
    %496 = vmatprep.subr.bf16.mxu0 0
    %497 = vmatpush1.bf16.msra.mxu0 %v480
    %498 = vmatprep.subr.bf16.mxu0 0
    %499 = vmatpush1.bf16.msra.mxu0 %v481
    %500 = vmatprep.subr.bf16.mxu0 0
    %501 = vmatpush1.bf16.msra.mxu0 %v482
    %502 = vmatprep.subr.bf16.mxu0 0
    %503 = vmatpush1.bf16.msra.mxu0 %v483
    %504 = vmatprep.subr.bf16.mxu0 0
    %505 = vmatpush1.bf16.msra.mxu0 %v484
    %506 = vmatprep.subr.bf16.mxu0 0
    %507 = vmatpush1.bf16.msra.mxu0 %v485
    %508 = vmatprep.subr.bf16.mxu0 0
    %509 = vmatpush1.bf16.msra.mxu0 %v486
    %510 = vmatprep.subr.bf16.mxu0 0
    %511 = vmatpush1.bf16.msra.mxu0 %v487
    %512 = vmatprep.subr.bf16.mxu0 0
    %513 = vmatpush1.bf16.msra.mxu0 0
    %514 = vmatprep.subr.bf16.mxu0 0
    %515 = vmatpush1.bf16.msra.mxu0 0
    %516 = vmatprep.subr.bf16.mxu0 0
    %517 = vmatpush1.bf16.msra.mxu0 0
    %518 = vmatprep.subr.bf16.mxu0 0
    %519 = vmatpush1.bf16.msra.mxu0 0
    %520 = vmatprep.subr.bf16.mxu0 0
    %521 = vmatpush1.bf16.msra.mxu0 0
    %522 = vmatprep.subr.bf16.mxu0 0
    %523 = vmatpush1.bf16.msra.mxu0 0
    %524 = vmatprep.subr.bf16.mxu0 0
    %525 = vmatpush1.bf16.msra.mxu0 0
    %526 = vmatprep.subr.bf16.mxu0 0
    %527 = vmatpush1.bf16.msra.mxu0 0
    %528 = vmatprep.mubr.bf16.mxu0 0
    %529 = vmatmul.mubr.bf16.gmra.mrb[0].mxu0 %v384
    %v530 = vpop.f32.mrb[0].mxu0
    %v531 = vadd.f32 0.0, %v530
    %v532 = vpop.f32.mrb[0].mxu0
    %v533 = vpop.f32.mrb[0].mxu0
    %v534 = vadd.f32 0.0, %v533
    %v535 = vpop.f32.mrb[0].mxu0
    %536 = vmatprep.mubr.bf16.mxu0 0
    %537 = vmatmul.mubr.bf16.gmra.mrb[0].mxu0 %v385
    %v538 = vpop.f32.mrb[0].mxu0
    %v539 = vadd.f32 0.0, %v538
    %v540 = vpop.f32.mrb[0].mxu0
    %v541 = vpop.f32.mrb[0].mxu0
    %v542 = vadd.f32 0.0, %v541
    %v543 = vpop.f32.mrb[0].mxu0
    %544 = vmatprep.mubr.bf16.mxu0 0
    %545 = vmatmul.mubr.bf16.gmra.mrb[0].mxu0 %v386
    %v546 = vpop.f32.mrb[0].mxu0
    %v547 = vadd.f32 0.0, %v546
    %v548 = vpop.f32.mrb[0].mxu0
    %v549 = vpop.f32.mrb[0].mxu0
    %v550 = vadd.f32 0.0, %v549
    %v551 = vpop.f32.mrb[0].mxu0
    %552 = vmatprep.mubr.bf16.mxu0 0
    %553 = vmatmul.mubr.bf16.gmra.mrb[0].mxu0 %v387
    %v554 = vpop.f32.mrb[0].mxu0
    %v555 = vadd.f32 0.0, %v554
    %v556 = vpop.f32.mrb[0].mxu0
    %v557 = vpop.f32.mrb[0].mxu0
    %v558 = vadd.f32 0.0, %v557
    %v559 = vpop.f32.mrb[0].mxu0
    %560 = vmatprep.mubr.bf16.mxu0 0
    %561 = vmatmul.mubr.bf16.gmra.mrb[0].mxu0 %v388
    %v562 = vpop.f32.mrb[0].mxu0
    %v563 = vadd.f32 0.0, %v562
    %v564 = vpop.f32.mrb[0].mxu0
    %v565 = vpop.f32.mrb[0].mxu0
    %v566 = vadd.f32 0.0, %v565
    %v567 = vpop.f32.mrb[0].mxu0
    %568 = vmatprep.mubr.bf16.mxu0 0
    %569 = vmatmul.mubr.bf16.gmra.mrb[0].mxu0 %v389
    %v570 = vpop.f32.mrb[0].mxu0
    %v571 = vadd.f32 0.0, %v570
    %v572 = vpop.f32.mrb[0].mxu0
    %v573 = vpop.f32.mrb[0].mxu0
    %v574 = vadd.f32 0.0, %v573
    %v575 = vpop.f32.mrb[0].mxu0
    %576 = vmatprep.mubr.bf16.mxu0 0
    %577 = vmatmul.mubr.bf16.gmra.mrb[0].mxu0 %v390
    %v578 = vpop.f32.mrb[0].mxu0
    %v579 = vadd.f32 0.0, %v578
    %v580 = vpop.f32.mrb[0].mxu0
    %v581 = vpop.f32.mrb[0].mxu0
    %v582 = vadd.f32 0.0, %v581
    %v583 = vpop.f32.mrb[0].mxu0
    %584 = vmatprep.mubr.bf16.mxu0 0
    %585 = vmatmul.mubr.bf16.gmra.mrb[0].mxu0 %v391
    %v586 = vpop.f32.mrb[0].mxu0
    %v587 = vadd.f32 0.0, %v586
    %v588 = vpop.f32.mrb[0].mxu0
    %v589 = vpop.f32.mrb[0].mxu0
    %v590 = vadd.f32 0.0, %v589
    %v591 = vpop.f32.mrb[0].mxu0
    %592 = vmatprep.mubr.bf16.mxu0 0
    %593 = vmatmul.mubr.bf16.gmra.mrb[0].mxu0 %v392
    %v594 = vpop.f32.mrb[0].mxu0
    %v595 = vadd.f32 0.0, %v594
    %v596 = vpop.f32.mrb[0].mxu0
    %v597 = vpop.f32.mrb[0].mxu0
    %v598 = vadd.f32 0.0, %v597
    %v599 = vpop.f32.mrb[0].mxu0
    %600 = vmatprep.mubr.bf16.mxu0 0
    %601 = vmatmul.mubr.bf16.gmra.mrb[0].mxu0 %v393
    %v602 = vpop.f32.mrb[0].mxu0
    %v603 = vadd.f32 0.0, %v602
    %v604 = vpop.f32.mrb[0].mxu0
    %v605 = vpop.f32.mrb[0].mxu0
    %v606 = vadd.f32 0.0, %v605
    %v607 = vpop.f32.mrb[0].mxu0
    %608 = vmatprep.mubr.bf16.mxu0 0
    %609 = vmatmul.mubr.bf16.gmra.mrb[0].mxu0 %v394
    %v610 = vpop.f32.mrb[0].mxu0
    %v611 = vadd.f32 0.0, %v610
    %v612 = vpop.f32.mrb[0].mxu0
    %v613 = vpop.f32.mrb[0].mxu0
    %v614 = vadd.f32 0.0, %v613
    %v615 = vpop.f32.mrb[0].mxu0
    %616 = vmatprep.mubr.bf16.mxu0 0
    %617 = vmatmul.mubr.bf16.gmra.mrb[0].mxu0 %v395
    %v618 = vpop.f32.mrb[0].mxu0
    %v619 = vadd.f32 0.0, %v618
    %v620 = vpop.f32.mrb[0].mxu0
    %v621 = vpop.f32.mrb[0].mxu0
    %v622 = vadd.f32 0.0, %v621
    %v623 = vpop.f32.mrb[0].mxu0
    %624 = vmatprep.mubr.bf16.mxu0 0
    %625 = vmatmul.mubr.bf16.gmra.mrb[0].mxu0 %v396
    %v626 = vpop.f32.mrb[0].mxu0
    %v627 = vadd.f32 0.0, %v626
    %v628 = vpop.f32.mrb[0].mxu0
    %v629 = vpop.f32.mrb[0].mxu0
    %v630 = vadd.f32 0.0, %v629
    %v631 = vpop.f32.mrb[0].mxu0
    %632 = vmatprep.mubr.bf16.mxu0 0
    %633 = vmatmul.mubr.bf16.gmra.mrb[0].mxu0 %v397
    %v634 = vpop.f32.mrb[0].mxu0
    %v635 = vadd.f32 0.0, %v634
    %v636 = vpop.f32.mrb[0].mxu0
    %v637 = vpop.f32.mrb[0].mxu0
    %v638 = vadd.f32 0.0, %v637
    %v639 = vpop.f32.mrb[0].mxu0
    %640 = vmatprep.mubr.bf16.mxu0 0
    %641 = vmatmul.mubr.bf16.gmra.mrb[0].mxu0 %v398
    %v642 = vpop.f32.mrb[0].mxu0
    %v643 = vadd.f32 0.0, %v642
    %v644 = vpop.f32.mrb[0].mxu0
    %v645 = vpop.f32.mrb[0].mxu0
    %v646 = vadd.f32 0.0, %v645
    %v647 = vpop.f32.mrb[0].mxu0
    %648 = vmatprep.mubr.bf16.mxu0 0
    %649 = vmatmul.mubr.bf16.gmra.mrb[0].mxu0 %v399
    %v650 = vpop.f32.mrb[0].mxu0
    %v651 = vadd.f32 0.0, %v650
    %v652 = vpop.f32.mrb[0].mxu0
    %v653 = vpop.f32.mrb[0].mxu0
    %v654 = vadd.f32 0.0, %v653
    %v655 = vpop.f32.mrb[0].mxu0
    %656 = vmatprep.mubr.bf16.mxu0 0
    %657 = vmatmul.mubr.bf16.gmra.mrb[0].mxu0 %v400
    %v658 = vpop.f32.mrb[0].mxu0
    %v659 = vadd.f32 0.0, %v658
    %v660 = vpop.f32.mrb[0].mxu0
    %v661 = vpop.f32.mrb[0].mxu0
    %v662 = vadd.f32 0.0, %v661
    %v663 = vpop.f32.mrb[0].mxu0
    %664 = vmatprep.mubr.bf16.mxu0 0
    %665 = vmatmul.mubr.bf16.gmra.mrb[0].mxu0 %v401
    %v666 = vpop.f32.mrb[0].mxu0
    %v667 = vadd.f32 0.0, %v666
    %v668 = vpop.f32.mrb[0].mxu0
    %v669 = vpop.f32.mrb[0].mxu0
    %v670 = vadd.f32 0.0, %v669
    %v671 = vpop.f32.mrb[0].mxu0
    %672 = vmatprep.mubr.bf16.mxu0 0
    %673 = vmatmul.mubr.bf16.gmra.mrb[0].mxu0 %v402
    %v674 = vpop.f32.mrb[0].mxu0
    %v675 = vadd.f32 0.0, %v674
    %v676 = vpop.f32.mrb[0].mxu0
    %v677 = vpop.f32.mrb[0].mxu0
    %v678 = vadd.f32 0.0, %v677
    %v679 = vpop.f32.mrb[0].mxu0
    %680 = vmatprep.mubr.bf16.mxu0 0
    %681 = vmatmul.mubr.bf16.gmra.mrb[0].mxu0 %v403
    %v682 = vpop.f32.mrb[0].mxu0
    %v683 = vadd.f32 0.0, %v682
    %v684 = vpop.f32.mrb[0].mxu0
    %v685 = vpop.f32.mrb[0].mxu0
    %v686 = vadd.f32 0.0, %v685
    %v687 = vpop.f32.mrb[0].mxu0
    %688 = vmatprep.mubr.bf16.mxu0 0
    %689 = vmatmul.mubr.bf16.gmra.mrb[0].mxu0 %v404
    %v690 = vpop.f32.mrb[0].mxu0
    %v691 = vadd.f32 0.0, %v690
    %v692 = vpop.f32.mrb[0].mxu0
    %v693 = vpop.f32.mrb[0].mxu0
    %v694 = vadd.f32 0.0, %v693
    %v695 = vpop.f32.mrb[0].mxu0
    %696 = vmatprep.mubr.bf16.mxu0 0
    %697 = vmatmul.mubr.bf16.gmra.mrb[0].mxu0 %v405
    %v698 = vpop.f32.mrb[0].mxu0
    %v699 = vadd.f32 0.0, %v698
    %v700 = vpop.f32.mrb[0].mxu0
    %v701 = vpop.f32.mrb[0].mxu0
    %v702 = vadd.f32 0.0, %v701
    %v703 = vpop.f32.mrb[0].mxu0
    %704 = vmatprep.mubr.bf16.mxu0 0
    %705 = vmatmul.mubr.bf16.gmra.mrb[0].mxu0 %v406
    %v706 = vpop.f32.mrb[0].mxu0
    %v707 = vadd.f32 0.0, %v706
    %v708 = vpop.f32.mrb[0].mxu0
    %v709 = vpop.f32.mrb[0].mxu0
    %v710 = vadd.f32 0.0, %v709
    %v711 = vpop.f32.mrb[0].mxu0
    %712 = vmatprep.mubr.bf16.mxu0 0
    %713 = vmatmul.mubr.bf16.gmra.mrb[0].mxu0 %v407
    %v714 = vpop.f32.mrb[0].mxu0
    %v715 = vadd.f32 0.0, %v714
    %v716 = vpop.f32.mrb[0].mxu0
    %v717 = vpop.f32.mrb[0].mxu0
    %v718 = vadd.f32 0.0, %v717
    %v719 = vpop.f32.mrb[0].mxu0
    %720 = vmatprep.mubr.bf16.mxu0 0
    %721 = vmatmul.mubr.bf16.gmra.mrb[0].mxu0 %v408
    %v722 = vpop.f32.mrb[0].mxu0
    %v723 = vadd.f32 0.0, %v722
    %v724 = vpop.f32.mrb[0].mxu0
    %v725 = vpop.f32.mrb[0].mxu0
    %v726 = vadd.f32 0.0, %v725
    %v727 = vpop.f32.mrb[0].mxu0
    %728 = vmatprep.mubr.bf16.mxu0 0
    %729 = vmatmul.mubr.bf16.gmra.mrb[0].mxu0 %v409
    %v730 = vpop.f32.mrb[0].mxu0
    %v731 = vadd.f32 0.0, %v730
    %v732 = vpop.f32.mrb[0].mxu0
    %v733 = vpop.f32.mrb[0].mxu0
    %v734 = vadd.f32 0.0, %v733
    %v735 = vpop.f32.mrb[0].mxu0
    %736 = vmatprep.mubr.bf16.mxu0 0
    %737 = vmatmul.mubr.bf16.gmra.mrb[0].mxu0 %v410
    %v738 = vpop.f32.mrb[0].mxu0
    %v739 = vadd.f32 0.0, %v738
    %v740 = vpop.f32.mrb[0].mxu0
    %v741 = vpop.f32.mrb[0].mxu0
    %v742 = vadd.f32 0.0, %v741
    %v743 = vpop.f32.mrb[0].mxu0
    %744 = vmatprep.mubr.bf16.mxu0 0
    %745 = vmatmul.mubr.bf16.gmra.mrb[0].mxu0 %v411
    %v746 = vpop.f32.mrb[0].mxu0
    %v747 = vadd.f32 0.0, %v746
    %v748 = vpop.f32.mrb[0].mxu0
    %v749 = vpop.f32.mrb[0].mxu0
    %v750 = vadd.f32 0.0, %v749
    %v751 = vpop.f32.mrb[0].mxu0
    %752 = vmatprep.mubr.bf16.mxu0 0
    %753 = vmatmul.mubr.bf16.gmra.mrb[0].mxu0 %v412
    %v754 = vpop.f32.mrb[0].mxu0
    %v755 = vadd.f32 0.0, %v754
    %v756 = vpop.f32.mrb[0].mxu0
    %v757 = vpop.f32.mrb[0].mxu0
    %v758 = vadd.f32 0.0, %v757
    %v759 = vpop.f32.mrb[0].mxu0
    %760 = vmatprep.mubr.bf16.mxu0 0
    %761 = vmatmul.mubr.bf16.gmra.mrb[0].mxu0 %v413
    %v762 = vpop.f32.mrb[0].mxu0
    %v763 = vadd.f32 0.0, %v762
    %v764 = vpop.f32.mrb[0].mxu0
    %v765 = vpop.f32.mrb[0].mxu0
    %v766 = vadd.f32 0.0, %v765
    %v767 = vpop.f32.mrb[0].mxu0
    %768 = vmatprep.mubr.bf16.mxu0 0
    %769 = vmatmul.mubr.bf16.gmra.mrb[0].mxu0 %v414
    %v770 = vpop.f32.mrb[0].mxu0
    %v771 = vadd.f32 0.0, %v770
    %v772 = vpop.f32.mrb[0].mxu0
    %v773 = vpop.f32.mrb[0].mxu0
    %v774 = vadd.f32 0.0, %v773
    %v775 = vpop.f32.mrb[0].mxu0
    %776 = vmatprep.mubr.bf16.mxu0 0
    %777 = vmatmul.mubr.bf16.gmra.mrb[0].mxu0 %v415
    %v778 = vpop.f32.mrb[0].mxu0
    %v779 = vadd.f32 0.0, %v778
    %v780 = vpop.f32.mrb[0].mxu0
    %v781 = vpop.f32.mrb[0].mxu0
    %v782 = vadd.f32 0.0, %v781
    %v783 = vpop.f32.mrb[0].mxu0
    %784 = vdwg.mxu0
    %v785 = vadd.f32 %v112, %v531
    %v786 = vadd.f32 %v113, %v534
    %v787 = vadd.f32 %v114, %v539
    %v788 = vadd.f32 %v115, %v542
    %v789 = vadd.f32 %v116, %v547
    %v790 = vadd.f32 %v117, %v550
    %v791 = vadd.f32 %v118, %v555
    %v792 = vadd.f32 %v119, %v558
    %v793 = vadd.f32 %v120, %v563
    %v794 = vadd.f32 %v121, %v566
    %v795 = vadd.f32 %v122, %v571
    %v796 = vadd.f32 %v123, %v574
    %v797 = vadd.f32 %v124, %v579
    %v798 = vadd.f32 %v125, %v582
    %v799 = vadd.f32 %v126, %v587
    %v800 = vadd.f32 %v127, %v590
    %v801 = vadd.f32 %v128, %v595
    %v802 = vadd.f32 %v129, %v598
    %v803 = vadd.f32 %v130, %v603
    %v804 = vadd.f32 %v131, %v606
    %v805 = vadd.f32 %v132, %v611
    %v806 = vadd.f32 %v133, %v614
    %v807 = vadd.f32 %v134, %v619
    %v808 = vadd.f32 %v135, %v622
    %v809 = vadd.f32 %v136, %v627
    %v810 = vadd.f32 %v137, %v630
    %v811 = vadd.f32 %v138, %v635
    %v812 = vadd.f32 %v139, %v638
    %v813 = vadd.f32 %v140, %v643
    %v814 = vadd.f32 %v141, %v646
    %v815 = vadd.f32 %v142, %v651
    %v816 = vadd.f32 %v143, %v654
    %v817 = vadd.f32 %v144, %v659
    %v818 = vadd.f32 %v145, %v662
    %v819 = vadd.f32 %v146, %v667
    %v820 = vadd.f32 %v147, %v670
    %v821 = vadd.f32 %v148, %v675
    %v822 = vadd.f32 %v149, %v678
    %v823 = vadd.f32 %v150, %v683
    %v824 = vadd.f32 %v151, %v686
    %v825 = vadd.f32 %v152, %v691
    %v826 = vadd.f32 %v153, %v694
    %v827 = vadd.f32 %v154, %v699
    %v828 = vadd.f32 %v155, %v702
    %v829 = vadd.f32 %v156, %v707
    %v830 = vadd.f32 %v157, %v710
    %v831 = vadd.f32 %v158, %v715
    %v832 = vadd.f32 %v159, %v718
    %v833 = vadd.f32 %v160, %v723
    %v834 = vadd.f32 %v161, %v726
    %v835 = vadd.f32 %v162, %v731
    %v836 = vadd.f32 %v163, %v734
    %v837 = vadd.f32 %v164, %v739
    %v838 = vadd.f32 %v165, %v742
    %v839 = vadd.f32 %v166, %v747
    %v840 = vadd.f32 %v167, %v750
    %v841 = vadd.f32 %v168, %v755
    %v842 = vadd.f32 %v169, %v758
    %v843 = vadd.f32 %v170, %v763
    %v844 = vadd.f32 %v171, %v766
    %v845 = vadd.f32 %v172, %v771
    %v846 = vadd.f32 %v173, %v774
    %v847 = vadd.f32 %v174, %v779
    %v848 = vadd.f32 %v175, %v782
    %849 = vst [vmem:[#allocation2] sm:$0xff] %v785
    %850 = vst [vmem:[#allocation2 + $0x8] sm:$0xff] %v786
    %851 = vst [vmem:[#allocation2 + $0x10] sm:$0xff] %v787
    %852 = vst [vmem:[#allocation2 + $0x18] sm:$0xff] %v788
    %853 = vst [vmem:[#allocation2 + $0x20] sm:$0xff] %v789
    %854 = vst [vmem:[#allocation2 + $0x28] sm:$0xff] %v790
    %855 = vst [vmem:[#allocation2 + $0x30] sm:$0xff] %v791
    %856 = vst [vmem:[#allocation2 + $0x38] sm:$0xff] %v792
    %857 = vst [vmem:[#allocation2 + $0x40] sm:$0xff] %v793
    %858 = vst [vmem:[#allocation2 + $0x48] sm:$0xff] %v794
    %859 = vst [vmem:[#allocation2 + $0x50] sm:$0xff] %v795
    %860 = vst [vmem:[#allocation2 + $0x58] sm:$0xff] %v796
    %861 = vst [vmem:[#allocation2 + $0x60] sm:$0xff] %v797
    %862 = vst [vmem:[#allocation2 + $0x68] sm:$0xff] %v798
    %863 = vst [vmem:[#allocation2 + $0x70] sm:$0xff] %v799
    %864 = vst [vmem:[#allocation2 + $0x78] sm:$0xff] %v800
    %865 = vst [vmem:[#allocation2 + $0x80] sm:$0xff] %v801
    %866 = vst [vmem:[#allocation2 + $0x88] sm:$0xff] %v802
    %867 = vst [vmem:[#allocation2 + $0x90] sm:$0xff] %v803
    %868 = vst [vmem:[#allocation2 + $0x98] sm:$0xff] %v804
    %869 = vst [vmem:[#allocation2 + $0xa0] sm:$0xff] %v805
    %870 = vst [vmem:[#allocation2 + $0xa8] sm:$0xff] %v806
    %871 = vst [vmem:[#allocation2 + $0xb0] sm:$0xff] %v807
    %872 = vst [vmem:[#allocation2 + $0xb8] sm:$0xff] %v808
    %873 = vst [vmem:[#allocation2 + $0xc0] sm:$0xff] %v809
    %874 = vst [vmem:[#allocation2 + $0xc8] sm:$0xff] %v810
    %875 = vst [vmem:[#allocation2 + $0xd0] sm:$0xff] %v811
    %876 = vst [vmem:[#allocation2 + $0xd8] sm:$0xff] %v812
    %877 = vst [vmem:[#allocation2 + $0xe0] sm:$0xff] %v813
    %878 = vst [vmem:[#allocation2 + $0xe8] sm:$0xff] %v814
    %879 = vst [vmem:[#allocation2 + $0xf0] sm:$0xff] %v815
    %880 = vst [vmem:[#allocation2 + $0xf8] sm:$0xff] %v816
    %881 = vst [vmem:[#allocation2 + $0x100] sm:$0xff] %v817
    %882 = vst [vmem:[#allocation2 + $0x108] sm:$0xff] %v818
    %883 = vst [vmem:[#allocation2 + $0x110] sm:$0xff] %v819
    %884 = vst [vmem:[#allocation2 + $0x118] sm:$0xff] %v820
    %885 = vst [vmem:[#allocation2 + $0x120] sm:$0xff] %v821
    %886 = vst [vmem:[#allocation2 + $0x128] sm:$0xff] %v822
    %887 = vst [vmem:[#allocation2 + $0x130] sm:$0xff] %v823
    %888 = vst [vmem:[#allocation2 + $0x138] sm:$0xff] %v824
    %889 = vst [vmem:[#allocation2 + $0x140] sm:$0xff] %v825
    %890 = vst [vmem:[#allocation2 + $0x148] sm:$0xff] %v826
    %891 = vst [vmem:[#allocation2 + $0x150] sm:$0xff] %v827
    %892 = vst [vmem:[#allocation2 + $0x158] sm:$0xff] %v828
    %893 = vst [vmem:[#allocation2 + $0x160] sm:$0xff] %v829
    %894 = vst [vmem:[#allocation2 + $0x168] sm:$0xff] %v830
    %895 = vst [vmem:[#allocation2 + $0x170] sm:$0xff] %v831
    %896 = vst [vmem:[#allocation2 + $0x178] sm:$0xff] %v832
    %897 = vst [vmem:[#allocation2 + $0x180] sm:$0xff] %v833
    %898 = vst [vmem:[#allocation2 + $0x188] sm:$0xff] %v834
    %899 = vst [vmem:[#allocation2 + $0x190] sm:$0xff] %v835
    %900 = vst [vmem:[#allocation2 + $0x198] sm:$0xff] %v836
    %901 = vst [vmem:[#allocation2 + $0x1a0] sm:$0xff] %v837
    %902 = vst [vmem:[#allocation2 + $0x1a8] sm:$0xff] %v838
    %903 = vst [vmem:[#allocation2 + $0x1b0] sm:$0xff] %v839
    %904 = vst [vmem:[#allocation2 + $0x1b8] sm:$0xff] %v840
    %905 = vst [vmem:[#allocation2 + $0x1c0] sm:$0xff] %v841
    %906 = vst [vmem:[#allocation2 + $0x1c8] sm:$0xff] %v842
    %907 = vst [vmem:[#allocation2 + $0x1d0] sm:$0xff] %v843
    %908 = vst [vmem:[#allocation2 + $0x1d8] sm:$0xff] %v844
    %909 = vst [vmem:[#allocation2 + $0x1e0] sm:$0xff] %v845
    %910 = vst [vmem:[#allocation2 + $0x1e8] sm:$0xff] %v846
    %911 = vst [vmem:[#allocation2 + $0x1f0] sm:$0xff] %v847
    %912 = vst [vmem:[#allocation2 + $0x1f8] sm:$0xff] %v848
    // Predicated region
    $region26: #{tpu_custom_call.1} parent=1 // pred_check
      %p913 = pneg %p44
    $region27: #{tpu_custom_call.1} parent=1 // pred_check_branch
      %915 = sbr.rel (%p913) target = $region29
    $region28: #{tpu_custom_call.1} parent=1 // pred_region
      %v916 = vld [vmem:[#allocation2] sm:$0xff]
      %v917 = vld [vmem:[#allocation2 + $0x8] sm:$0xff]
      %v918 = vld [vmem:[#allocation2 + $0x10] sm:$0xff]
      %v919 = vld [vmem:[#allocation2 + $0x18] sm:$0xff]
      %v920 = vld [vmem:[#allocation2 + $0x20] sm:$0xff]
      %v921 = vld [vmem:[#allocation2 + $0x28] sm:$0xff]
      %v922 = vld [vmem:[#allocation2 + $0x30] sm:$0xff]
      %v923 = vld [vmem:[#allocation2 + $0x38] sm:$0xff]
      %v924 = vld [vmem:[#allocation2 + $0x40] sm:$0xff]
      %v925 = vld [vmem:[#allocation2 + $0x48] sm:$0xff]
      %v926 = vld [vmem:[#allocation2 + $0x50] sm:$0xff]
      %v927 = vld [vmem:[#allocation2 + $0x58] sm:$0xff]
      %v928 = vld [vmem:[#allocation2 + $0x60] sm:$0xff]
      %v929 = vld [vmem:[#allocation2 + $0x68] sm:$0xff]
      %v930 = vld [vmem:[#allocation2 + $0x70] sm:$0xff]
      %v931 = vld [vmem:[#allocation2 + $0x78] sm:$0xff]
      %v932 = vld [vmem:[#allocation2 + $0x80] sm:$0xff]
      %v933 = vld [vmem:[#allocation2 + $0x88] sm:$0xff]
      %v934 = vld [vmem:[#allocation2 + $0x90] sm:$0xff]
      %v935 = vld [vmem:[#allocation2 + $0x98] sm:$0xff]
      %v936 = vld [vmem:[#allocation2 + $0xa0] sm:$0xff]
      %v937 = vld [vmem:[#allocation2 + $0xa8] sm:$0xff]
      %v938 = vld [vmem:[#allocation2 + $0xb0] sm:$0xff]
      %v939 = vld [vmem:[#allocation2 + $0xb8] sm:$0xff]
      %v940 = vld [vmem:[#allocation2 + $0xc0] sm:$0xff]
      %v941 = vld [vmem:[#allocation2 + $0xc8] sm:$0xff]
      %v942 = vld [vmem:[#allocation2 + $0xd0] sm:$0xff]
      %v943 = vld [vmem:[#allocation2 + $0xd8] sm:$0xff]
      %v944 = vld [vmem:[#allocation2 + $0xe0] sm:$0xff]
      %v945 = vld [vmem:[#allocation2 + $0xe8] sm:$0xff]
      %v946 = vld [vmem:[#allocation2 + $0xf0] sm:$0xff]
      %v947 = vld [vmem:[#allocation2 + $0xf8] sm:$0xff]
      %v948 = vld [vmem:[#allocation2 + $0x100] sm:$0xff]
      %v949 = vld [vmem:[#allocation2 + $0x108] sm:$0xff]
      %v950 = vld [vmem:[#allocation2 + $0x110] sm:$0xff]
      %v951 = vld [vmem:[#allocation2 + $0x118] sm:$0xff]
      %v952 = vld [vmem:[#allocation2 + $0x120] sm:$0xff]
      %v953 = vld [vmem:[#allocation2 + $0x128] sm:$0xff]
      %v954 = vld [vmem:[#allocation2 + $0x130] sm:$0xff]
      %v955 = vld [vmem:[#allocation2 + $0x138] sm:$0xff]
      %v956 = vld [vmem:[#allocation2 + $0x140] sm:$0xff]
      %v957 = vld [vmem:[#allocation2 + $0x148] sm:$0xff]
      %v958 = vld [vmem:[#allocation2 + $0x150] sm:$0xff]
      %v959 = vld [vmem:[#allocation2 + $0x158] sm:$0xff]
      %v960 = vld [vmem:[#allocation2 + $0x160] sm:$0xff]
      %v961 = vld [vmem:[#allocation2 + $0x168] sm:$0xff]
      %v962 = vld [vmem:[#allocation2 + $0x170] sm:$0xff]
      %v963 = vld [vmem:[#allocation2 + $0x178] sm:$0xff]
      %v964 = vld [vmem:[#allocation2 + $0x180] sm:$0xff]
      %v965 = vld [vmem:[#allocation2 + $0x188] sm:$0xff]
      %v966 = vld [vmem:[#allocation2 + $0x190] sm:$0xff]
      %v967 = vld [vmem:[#allocation2 + $0x198] sm:$0xff]
      %v968 = vld [vmem:[#allocation2 + $0x1a0] sm:$0xff]
      %v969 = vld [vmem:[#allocation2 + $0x1a8] sm:$0xff]
      %v970 = vld [vmem:[#allocation2 + $0x1b0] sm:$0xff]
      %v971 = vld [vmem:[#allocation2 + $0x1b8] sm:$0xff]
      %v972 = vld [vmem:[#allocation2 + $0x1c0] sm:$0xff]
      %v973 = vld [vmem:[#allocation2 + $0x1c8] sm:$0xff]
      %v974 = vld [vmem:[#allocation2 + $0x1d0] sm:$0xff]
      %v975 = vld [vmem:[#allocation2 + $0x1d8] sm:$0xff]
      %v976 = vld [vmem:[#allocation2 + $0x1e0] sm:$0xff]
      %v977 = vld [vmem:[#allocation2 + $0x1e8] sm:$0xff]
      %v978 = vld [vmem:[#allocation2 + $0x1f0] sm:$0xff]
      %v979 = vld [vmem:[#allocation2 + $0x1f8] sm:$0xff]
      %v980 = vld [vmem:[%s2] sm:$0x1]
      %v982 = vlaneseq
      %v983 = vshrl.u32 %v982, 7
      %v984 = vsub.s32 0, %v983
      %v985 = vrot.slane %v980, %v984
      %v987 = vadd.f32 %v916, %v985
      %v988 = vadd.f32 %v917, %v985
      %v989 = vadd.f32 %v918, %v985
      %v990 = vadd.f32 %v919, %v985
      %v991 = vadd.f32 %v920, %v985
      %v992 = vadd.f32 %v921, %v985
      %v993 = vadd.f32 %v922, %v985
      %v994 = vadd.f32 %v923, %v985
      %v995 = vadd.f32 %v924, %v985
      %v996 = vadd.f32 %v925, %v985
      %v997 = vadd.f32 %v926, %v985
      %v998 = vadd.f32 %v927, %v985
      %v999 = vadd.f32 %v928, %v985
      %v1000 = vadd.f32 %v929, %v985
      %v1001 = vadd.f32 %v930, %v985
      %v1002 = vadd.f32 %v931, %v985
      %v1003 = vadd.f32 %v932, %v985
      %v1004 = vadd.f32 %v933, %v985
      %v1005 = vadd.f32 %v934, %v985
      %v1006 = vadd.f32 %v935, %v985
      %v1007 = vadd.f32 %v936, %v985
      %v1008 = vadd.f32 %v937, %v985
      %v1009 = vadd.f32 %v938, %v985
      %v1010 = vadd.f32 %v939, %v985
      %v1011 = vadd.f32 %v940, %v985
      %v1012 = vadd.f32 %v941, %v985
      %v1013 = vadd.f32 %v942, %v985
      %v1014 = vadd.f32 %v943, %v985
      %v1015 = vadd.f32 %v944, %v985
      %v1016 = vadd.f32 %v945, %v985
      %v1017 = vadd.f32 %v946, %v985
      %v1018 = vadd.f32 %v947, %v985
      %v1019 = vadd.f32 %v948, %v985
      %v1020 = vadd.f32 %v949, %v985
      %v1021 = vadd.f32 %v950, %v985
      %v1022 = vadd.f32 %v951, %v985
      %v1023 = vadd.f32 %v952, %v985
      %v1024 = vadd.f32 %v953, %v985
      %v1025 = vadd.f32 %v954, %v985
      %v1026 = vadd.f32 %v955, %v985
      %v1027 = vadd.f32 %v956, %v985
      %v1028 = vadd.f32 %v957, %v985
      %v1029 = vadd.f32 %v958, %v985
      %v1030 = vadd.f32 %v959, %v985
      %v1031 = vadd.f32 %v960, %v985
      %v1032 = vadd.f32 %v961, %v985
      %v1033 = vadd.f32 %v962, %v985
      %v1034 = vadd.f32 %v963, %v985
      %v1035 = vadd.f32 %v964, %v985
      %v1036 = vadd.f32 %v965, %v985
      %v1037 = vadd.f32 %v966, %v985
      %v1038 = vadd.f32 %v967, %v985
      %v1039 = vadd.f32 %v968, %v985
      %v1040 = vadd.f32 %v969, %v985
      %v1041 = vadd.f32 %v970, %v985
      %v1042 = vadd.f32 %v971, %v985
      %v1043 = vadd.f32 %v972, %v985
      %v1044 = vadd.f32 %v973, %v985
      %v1045 = vadd.f32 %v974, %v985
      %v1046 = vadd.f32 %v975, %v985
      %v1047 = vadd.f32 %v976, %v985
      %v1048 = vadd.f32 %v977, %v985
      %v1049 = vadd.f32 %v978, %v985
      %v1050 = vadd.f32 %v979, %v985
      %v1051 = vmax.f32 %v987, 0.0
      %v1052 = vmax.f32 %v988, 0.0
      %v1053 = vmax.f32 %v989, 0.0
      %v1054 = vmax.f32 %v990, 0.0
      %v1055 = vmax.f32 %v991, 0.0
      %v1056 = vmax.f32 %v992, 0.0
      %v1057 = vmax.f32 %v993, 0.0
      %v1058 = vmax.f32 %v994, 0.0
      %v1059 = vmax.f32 %v995, 0.0
      %v1060 = vmax.f32 %v996, 0.0
      %v1061 = vmax.f32 %v997, 0.0
      %v1062 = vmax.f32 %v998, 0.0
      %v1063 = vmax.f32 %v999, 0.0
      %v1064 = vmax.f32 %v1000, 0.0
      %v1065 = vmax.f32 %v1001, 0.0
      %v1066 = vmax.f32 %v1002, 0.0
      %v1067 = vmax.f32 %v1003, 0.0
      %v1068 = vmax.f32 %v1004, 0.0
      %v1069 = vmax.f32 %v1005, 0.0
      %v1070 = vmax.f32 %v1006, 0.0
      %v1071 = vmax.f32 %v1007, 0.0
      %v1072 = vmax.f32 %v1008, 0.0
      %v1073 = vmax.f32 %v1009, 0.0
      %v1074 = vmax.f32 %v1010, 0.0
      %v1075 = vmax.f32 %v1011, 0.0
      %v1076 = vmax.f32 %v1012, 0.0
      %v1077 = vmax.f32 %v1013, 0.0
      %v1078 = vmax.f32 %v1014, 0.0
      %v1079 = vmax.f32 %v1015, 0.0
      %v1080 = vmax.f32 %v1016, 0.0
      %v1081 = vmax.f32 %v1017, 0.0
      %v1082 = vmax.f32 %v1018, 0.0
      %v1083 = vmax.f32 %v1019, 0.0
      %v1084 = vmax.f32 %v1020, 0.0
      %v1085 = vmax.f32 %v1021, 0.0
      %v1086 = vmax.f32 %v1022, 0.0
      %v1087 = vmax.f32 %v1023, 0.0
      %v1088 = vmax.f32 %v1024, 0.0
      %v1089 = vmax.f32 %v1025, 0.0
      %v1090 = vmax.f32 %v1026, 0.0
      %v1091 = vmax.f32 %v1027, 0.0
      %v1092 = vmax.f32 %v1028, 0.0
      %v1093 = vmax.f32 %v1029, 0.0
      %v1094 = vmax.f32 %v1030, 0.0
      %v1095 = vmax.f32 %v1031, 0.0
      %v1096 = vmax.f32 %v1032, 0.0
      %v1097 = vmax.f32 %v1033, 0.0
      %v1098 = vmax.f32 %v1034, 0.0
      %v1099 = vmax.f32 %v1035, 0.0
      %v1100 = vmax.f32 %v1036, 0.0
      %v1101 = vmax.f32 %v1037, 0.0
      %v1102 = vmax.f32 %v1038, 0.0
      %v1103 = vmax.f32 %v1039, 0.0
      %v1104 = vmax.f32 %v1040, 0.0
      %v1105 = vmax.f32 %v1041, 0.0
      %v1106 = vmax.f32 %v1042, 0.0
      %v1107 = vmax.f32 %v1043, 0.0
      %v1108 = vmax.f32 %v1044, 0.0
      %v1109 = vmax.f32 %v1045, 0.0
      %v1110 = vmax.f32 %v1046, 0.0
      %v1111 = vmax.f32 %v1047, 0.0
      %v1112 = vmax.f32 %v1048, 0.0
      %v1113 = vmax.f32 %v1049, 0.0
      %v1114 = vmax.f32 %v1050, 0.0
      %v1115 = vpack.c.bf16 %v1052, %v1051
      %v1116 = vpack.c.bf16 %v1054, %v1053
      %v1117 = vpack.c.bf16 %v1056, %v1055
      %v1118 = vpack.c.bf16 %v1058, %v1057
      %v1119 = vpack.c.bf16 %v1060, %v1059
      %v1120 = vpack.c.bf16 %v1062, %v1061
      %v1121 = vpack.c.bf16 %v1064, %v1063
      %v1122 = vpack.c.bf16 %v1066, %v1065
      %v1123 = vpack.c.bf16 %v1068, %v1067
      %v1124 = vpack.c.bf16 %v1070, %v1069
      %v1125 = vpack.c.bf16 %v1072, %v1071
      %v1126 = vpack.c.bf16 %v1074, %v1073
      %v1127 = vpack.c.bf16 %v1076, %v1075
      %v1128 = vpack.c.bf16 %v1078, %v1077
      %v1129 = vpack.c.bf16 %v1080, %v1079
      %v1130 = vpack.c.bf16 %v1082, %v1081
      %v1131 = vpack.c.bf16 %v1084, %v1083
      %v1132 = vpack.c.bf16 %v1086, %v1085
      %v1133 = vpack.c.bf16 %v1088, %v1087
      %v1134 = vpack.c.bf16 %v1090, %v1089
      %v1135 = vpack.c.bf16 %v1092, %v1091
      %v1136 = vpack.c.bf16 %v1094, %v1093
      %v1137 = vpack.c.bf16 %v1096, %v1095
      %v1138 = vpack.c.bf16 %v1098, %v1097
      %v1139 = vpack.c.bf16 %v1100, %v1099
      %v1140 = vpack.c.bf16 %v1102, %v1101
      %v1141 = vpack.c.bf16 %v1104, %v1103
      %v1142 = vpack.c.bf16 %v1106, %v1105
      %v1143 = vpack.c.bf16 %v1108, %v1107
      %v1144 = vpack.c.bf16 %v1110, %v1109
      %v1145 = vpack.c.bf16 %v1112, %v1111
      %v1146 = vpack.c.bf16 %v1114, %v1113
      %v1179 = vunpack.c.l.b16 %v1115
      %v1180 = vunpack.c.h.b16 %v1115
      %v1181 = vunpack.c.l.b16 %v1116
      %v1182 = vunpack.c.h.b16 %v1116
      %v1183 = vunpack.c.l.b16 %v1117
      %v1184 = vunpack.c.h.b16 %v1117
      %v1185 = vunpack.c.l.b16 %v1118
      %v1186 = vunpack.c.h.b16 %v1118
      %v1187 = vunpack.c.l.b16 %v1119
      %v1188 = vunpack.c.h.b16 %v1119
      %v1189 = vunpack.c.l.b16 %v1120
      %v1190 = vunpack.c.h.b16 %v1120
      %v1191 = vunpack.c.l.b16 %v1121
      %v1192 = vunpack.c.h.b16 %v1121
      %v1193 = vunpack.c.l.b16 %v1122
      %v1194 = vunpack.c.h.b16 %v1122
      %v1195 = vunpack.c.l.b16 %v1123
      %v1196 = vunpack.c.h.b16 %v1123
      %v1197 = vunpack.c.l.b16 %v1124
      %v1198 = vunpack.c.h.b16 %v1124
      %v1199 = vunpack.c.l.b16 %v1125
      %v1200 = vunpack.c.h.b16 %v1125
      %v1201 = vunpack.c.l.b16 %v1126
      %v1202 = vunpack.c.h.b16 %v1126
      %v1203 = vunpack.c.l.b16 %v1127
      %v1204 = vunpack.c.h.b16 %v1127
      %v1205 = vunpack.c.l.b16 %v1128
      %v1206 = vunpack.c.h.b16 %v1128
      %v1207 = vunpack.c.l.b16 %v1129
      %v1208 = vunpack.c.h.b16 %v1129
      %v1209 = vunpack.c.l.b16 %v1130
      %v1210 = vunpack.c.h.b16 %v1130
      %v1211 = vunpack.c.l.b16 %v1131
      %v1212 = vunpack.c.h.b16 %v1131
      %v1213 = vunpack.c.l.b16 %v1132
      %v1214 = vunpack.c.h.b16 %v1132
      %v1215 = vunpack.c.l.b16 %v1133
      %v1216 = vunpack.c.h.b16 %v1133
      %v1217 = vunpack.c.l.b16 %v1134
      %v1218 = vunpack.c.h.b16 %v1134
      %v1219 = vunpack.c.l.b16 %v1135
      %v1220 = vunpack.c.h.b16 %v1135
      %v1221 = vunpack.c.l.b16 %v1136
      %v1222 = vunpack.c.h.b16 %v1136
      %v1223 = vunpack.c.l.b16 %v1137
      %v1224 = vunpack.c.h.b16 %v1137
      %v1225 = vunpack.c.l.b16 %v1138
      %v1226 = vunpack.c.h.b16 %v1138
      %v1227 = vunpack.c.l.b16 %v1139
      %v1228 = vunpack.c.h.b16 %v1139
      %v1229 = vunpack.c.l.b16 %v1140
      %v1230 = vunpack.c.h.b16 %v1140
      %v1231 = vunpack.c.l.b16 %v1141
      %v1232 = vunpack.c.h.b16 %v1141
      %v1233 = vunpack.c.l.b16 %v1142
      %v1234 = vunpack.c.h.b16 %v1142
      %v1235 = vunpack.c.l.b16 %v1143
      %v1236 = vunpack.c.h.b16 %v1143
      %v1237 = vunpack.c.l.b16 %v1144
      %v1238 = vunpack.c.h.b16 %v1144
      %v1239 = vunpack.c.l.b16 %v1145
      %v1240 = vunpack.c.h.b16 %v1145
      %v1241 = vunpack.c.l.b16 %v1146
      %v1242 = vunpack.c.h.b16 %v1146
      %v1243 = vpack.c.b16 %v1179, %v1179
      %v1244 = vpack.c.b16 %v1180, %v1180
      %v1245 = vpack.c.b16 %v1181, %v1181
      %v1246 = vpack.c.b16 %v1182, %v1182
      %v1247 = vpack.c.b16 %v1183, %v1183
      %v1248 = vpack.c.b16 %v1184, %v1184
      %v1249 = vpack.c.b16 %v1185, %v1185
      %v1250 = vpack.c.b16 %v1186, %v1186
      %v1251 = vpack.c.b16 %v1187, %v1187
      %v1252 = vpack.c.b16 %v1188, %v1188
      %v1253 = vpack.c.b16 %v1189, %v1189
      %v1254 = vpack.c.b16 %v1190, %v1190
      %v1255 = vpack.c.b16 %v1191, %v1191
      %v1256 = vpack.c.b16 %v1192, %v1192
      %v1257 = vpack.c.b16 %v1193, %v1193
      %v1258 = vpack.c.b16 %v1194, %v1194
      %v1259 = vpack.c.b16 %v1195, %v1195
      %v1260 = vpack.c.b16 %v1196, %v1196
      %v1261 = vpack.c.b16 %v1197, %v1197
      %v1262 = vpack.c.b16 %v1198, %v1198
      %v1263 = vpack.c.b16 %v1199, %v1199
      %v1264 = vpack.c.b16 %v1200, %v1200
      %v1265 = vpack.c.b16 %v1201, %v1201
      %v1266 = vpack.c.b16 %v1202, %v1202
      %v1267 = vpack.c.b16 %v1203, %v1203
      %v1268 = vpack.c.b16 %v1204, %v1204
      %v1269 = vpack.c.b16 %v1205, %v1205
      %v1270 = vpack.c.b16 %v1206, %v1206
      %v1271 = vpack.c.b16 %v1207, %v1207
      %v1272 = vpack.c.b16 %v1208, %v1208
      %v1273 = vpack.c.b16 %v1209, %v1209
      %v1274 = vpack.c.b16 %v1210, %v1210
      %v1275 = vpack.c.b16 %v1211, %v1211
      %v1276 = vpack.c.b16 %v1212, %v1212
      %v1277 = vpack.c.b16 %v1213, %v1213
      %v1278 = vpack.c.b16 %v1214, %v1214
      %v1279 = vpack.c.b16 %v1215, %v1215
      %v1280 = vpack.c.b16 %v1216, %v1216
      %v1281 = vpack.c.b16 %v1217, %v1217
      %v1282 = vpack.c.b16 %v1218, %v1218
      %v1283 = vpack.c.b16 %v1219, %v1219
      %v1284 = vpack.c.b16 %v1220, %v1220
      %v1285 = vpack.c.b16 %v1221, %v1221
      %v1286 = vpack.c.b16 %v1222, %v1222
      %v1287 = vpack.c.b16 %v1223, %v1223
      %v1288 = vpack.c.b16 %v1224, %v1224
      %v1289 = vpack.c.b16 %v1225, %v1225
      %v1290 = vpack.c.b16 %v1226, %v1226
      %v1291 = vpack.c.b16 %v1227, %v1227
      %v1292 = vpack.c.b16 %v1228, %v1228
      %v1293 = vpack.c.b16 %v1229, %v1229
      %v1294 = vpack.c.b16 %v1230, %v1230
      %v1295 = vpack.c.b16 %v1231, %v1231
      %v1296 = vpack.c.b16 %v1232, %v1232
      %v1297 = vpack.c.b16 %v1233, %v1233
      %v1298 = vpack.c.b16 %v1234, %v1234
      %v1299 = vpack.c.b16 %v1235, %v1235
      %v1300 = vpack.c.b16 %v1236, %v1236
      %v1301 = vpack.c.b16 %v1237, %v1237
      %v1302 = vpack.c.b16 %v1238, %v1238
      %v1303 = vpack.c.b16 %v1239, %v1239
      %v1304 = vpack.c.b16 %v1240, %v1240
      %v1305 = vpack.c.b16 %v1241, %v1241
      %v1306 = vpack.c.b16 %v1242, %v1242
      %1371 = vst [vmem:[#allocation8] sm:$0xf] %v1243
      %1372 = vst [vmem:[#allocation8 + $0x4] sm:$0xf] %v1244
      %1373 = vst [vmem:[#allocation8 + $0x8] sm:$0xf] %v1245
      %1374 = vst [vmem:[#allocation8 + $0xc] sm:$0xf] %v1246
      %1375 = vst [vmem:[#allocation8 + $0x10] sm:$0xf] %v1247
      %1376 = vst [vmem:[#allocation8 + $0x14] sm:$0xf] %v1248
      %1377 = vst [vmem:[#allocation8 + $0x18] sm:$0xf] %v1249
      %1378 = vst [vmem:[#allocation8 + $0x1c] sm:$0xf] %v1250
      %1379 = vst [vmem:[#allocation8 + $0x20] sm:$0xf] %v1251
      %1380 = vst [vmem:[#allocation8 + $0x24] sm:$0xf] %v1252
      %1381 = vst [vmem:[#allocation8 + $0x28] sm:$0xf] %v1253
      %1382 = vst [vmem:[#allocation8 + $0x2c] sm:$0xf] %v1254
      %1383 = vst [vmem:[#allocation8 + $0x30] sm:$0xf] %v1255
      %1384 = vst [vmem:[#allocation8 + $0x34] sm:$0xf] %v1256
      %1385 = vst [vmem:[#allocation8 + $0x38] sm:$0xf] %v1257
      %1386 = vst [vmem:[#allocation8 + $0x3c] sm:$0xf] %v1258
      %1387 = vst [vmem:[#allocation8 + $0x40] sm:$0xf] %v1259
      %1388 = vst [vmem:[#allocation8 + $0x44] sm:$0xf] %v1260
      %1389 = vst [vmem:[#allocation8 + $0x48] sm:$0xf] %v1261
      %1390 = vst [vmem:[#allocation8 + $0x4c] sm:$0xf] %v1262
      %1391 = vst [vmem:[#allocation8 + $0x50] sm:$0xf] %v1263
      %1392 = vst [vmem:[#allocation8 + $0x54] sm:$0xf] %v1264
      %1393 = vst [vmem:[#allocation8 + $0x58] sm:$0xf] %v1265
      %1394 = vst [vmem:[#allocation8 + $0x5c] sm:$0xf] %v1266
      %1395 = vst [vmem:[#allocation8 + $0x60] sm:$0xf] %v1267
      %1396 = vst [vmem:[#allocation8 + $0x64] sm:$0xf] %v1268
      %1397 = vst [vmem:[#allocation8 + $0x68] sm:$0xf] %v1269
      %1398 = vst [vmem:[#allocation8 + $0x6c] sm:$0xf] %v1270
      %1399 = vst [vmem:[#allocation8 + $0x70] sm:$0xf] %v1271
      %1400 = vst [vmem:[#allocation8 + $0x74] sm:$0xf] %v1272
      %1401 = vst [vmem:[#allocation8 + $0x78] sm:$0xf] %v1273
      %1402 = vst [vmem:[#allocation8 + $0x7c] sm:$0xf] %v1274
      %1403 = vst [vmem:[#allocation8 + $0x80] sm:$0xf] %v1275
      %1404 = vst [vmem:[#allocation8 + $0x84] sm:$0xf] %v1276
      %1405 = vst [vmem:[#allocation8 + $0x88] sm:$0xf] %v1277
      %1406 = vst [vmem:[#allocation8 + $0x8c] sm:$0xf] %v1278
      %1407 = vst [vmem:[#allocation8 + $0x90] sm:$0xf] %v1279
      %1408 = vst [vmem:[#allocation8 + $0x94] sm:$0xf] %v1280
      %1409 = vst [vmem:[#allocation8 + $0x98] sm:$0xf] %v1281
      %1410 = vst [vmem:[#allocation8 + $0x9c] sm:$0xf] %v1282
      %1411 = vst [vmem:[#allocation8 + $0xa0] sm:$0xf] %v1283
      %1412 = vst [vmem:[#allocation8 + $0xa4] sm:$0xf] %v1284
      %1413 = vst [vmem:[#allocation8 + $0xa8] sm:$0xf] %v1285
      %1414 = vst [vmem:[#allocation8 + $0xac] sm:$0xf] %v1286
      %1415 = vst [vmem:[#allocation8 + $0xb0] sm:$0xf] %v1287
      %1416 = vst [vmem:[#allocation8 + $0xb4] sm:$0xf] %v1288
      %1417 = vst [vmem:[#allocation8 + $0xb8] sm:$0xf] %v1289
      %1418 = vst [vmem:[#allocation8 + $0xbc] sm:$0xf] %v1290
      %1419 = vst [vmem:[#allocation8 + $0xc0] sm:$0xf] %v1291
      %1420 = vst [vmem:[#allocation8 + $0xc4] sm:$0xf] %v1292
      %1421 = vst [vmem:[#allocation8 + $0xc8] sm:$0xf] %v1293
      %1422 = vst [vmem:[#allocation8 + $0xcc] sm:$0xf] %v1294
      %1423 = vst [vmem:[#allocation8 + $0xd0] sm:$0xf] %v1295
      %1424 = vst [vmem:[#allocation8 + $0xd4] sm:$0xf] %v1296
      %1425 = vst [vmem:[#allocation8 + $0xd8] sm:$0xf] %v1297
      %1426 = vst [vmem:[#allocation8 + $0xdc] sm:$0xf] %v1298
      %1427 = vst [vmem:[#allocation8 + $0xe0] sm:$0xf] %v1299
      %1428 = vst [vmem:[#allocation8 + $0xe4] sm:$0xf] %v1300
      %1429 = vst [vmem:[#allocation8 + $0xe8] sm:$0xf] %v1301
      %1430 = vst [vmem:[#allocation8 + $0xec] sm:$0xf] %v1302
      %1431 = vst [vmem:[#allocation8 + $0xf0] sm:$0xf] %v1303
      %1432 = vst [vmem:[#allocation8 + $0xf4] sm:$0xf] %v1304
      %1433 = vst [vmem:[#allocation8 + $0xf8] sm:$0xf] %v1305
      %1434 = vst [vmem:[#allocation8 + $0xfc] sm:$0xf] %v1306
    $region29: #{tpu_custom_call.1} parent=1 // pred_fallthru
      _
    // Predicated region
    $region30: #{tpu_custom_call.1} parent=1 // pred_check
      _
    $region31: #{tpu_custom_call.1} parent=1 // pred_check_branch
      %1436 = sbr.rel (0) target = $region33
    $region32: #{tpu_custom_call.1} parent=1 // pred_region
      %s1438 = ssub.s32 4096, 4096
      %1439 = vsyncadd [#allocation5], %s1438
      %s1440 = sshll.u32 [#allocation8], 4
      %s1441 = int_to_ptr.vmem [resolvable:$true] %s1440
      %1446 = dma.vmem_to_hbm [thread:$0]  %s1441, 4096, %s3, [#allocation5], 64, 64, 4
    $region33: #{tpu_custom_call.1} parent=1 // pred_fallthru
      _
    // Predicated region
    $region34: #{tpu_custom_call.1} parent=1 // pred_check
      _
    $region35: #{tpu_custom_call.1} parent=1 // pred_check_branch
      %1448 = sbr.rel (0) target = $region37
    $region36: #{tpu_custom_call.1} parent=1 // pred_region
      %1449 = dma.done [#allocation5], 4096
    $region37: #{tpu_custom_call.1} parent=1 // pred_fallthru
      _
    %1450 = vsyncpa [#allocation4], 1
    %1451 = vsyncpa [#allocation7], 1
    %1452 = vsyncpa [#allocation5], 1

</llo_original>
